<compile_context>
chip_gen: v7x
topology: tpu7x:2x2x1
jax: 0.10.0
libtpu: 0.0.40
codegen_flags: <defaults>
</compile_context>

<pallas_src>
import functools

import numpy as np
import jax
import jax.numpy as jnp
from jax import lax
from jax.experimental import pallas as pl
from jax.experimental.pallas import tpu as pltpu

ALPHA = 0.25          # focal loss alpha
GAMMA = 2.0           # focal loss gamma (hard-coded as q*q below)
BETA = 1.0 / 9.0      # smooth-L1 beta
CLS_WEIGHT = 1.0      # args['cls_weight']
REG_COE = 2.0         # args['reg']

_LANES = 128
_SUBLANES = 8


def _round_up(x, m):
    return ((x + m - 1) // m) * m


def _smooth_l1(n):
    return jnp.where(n < BETA, (0.5 / BETA) * n * n, n - 0.5 * BETA)


def _fold8(x):
    """(chunk, 128) -> (8, 128): sum of sublane-aligned row groups (pure VPU adds)."""
    return jnp.sum(x.reshape(-1, _SUBLANES, _LANES), axis=0)


def _build_kernel(r_tile, chunk, total_rows, approx_recip):
    """Kernel over one (r_tile, 128) anchor tile of one batch element."""
    ragged = (total_rows % r_tile) != 0
    static_chunks = r_tile // chunk

    def kernel(cls_ref, lab_ref, bp_ref, bt_ref, ocls_ref, oreg_ref, opos_ref):
        def body(ci, carry):
            cls_acc, reg_acc, pos_acc = carry
            off = pl.multiple_of(ci * chunk, chunk)
            rows = pl.ds(off, chunk)

            x = cls_ref[rows, :].astype(jnp.float32)       # (chunk, 128) logits
            lab = lab_ref[rows, :].astype(jnp.float32)     # labels in {-1, 0, 1}

            pos_b = lab > 0.0
            pos = pos_b.astype(jnp.float32)                # also the one-hot target
            cls_mask = (lab >= 0.0).astype(jnp.float32)    # 0 on padded anchors

            # ---- sigmoid focal classification loss (shared exp(-|x|)) ------
            e = jnp.exp(-jnp.abs(x))
            bce = jnp.maximum(x, 0.0) - x * pos + jnp.log1p(e)
            inv1pe = pl.reciprocal(1.0 + e, approx=approx_recip)
            p = jnp.where(x >= 0.0, inv1pe, e * inv1pe)    # sigmoid(x)
            q = jnp.where(pos_b, 1.0 - p, p)               # pt
            alpha_w = (1.0 - ALPHA) + pos * (2.0 * ALPHA - 1.0)
            cls_per = alpha_w * (q * q) * bce * cls_mask

            # ---- regression: add_sin_difference + smooth-L1 -----------------
            reg = None
            for c in range(6):
                p_c = bp_ref[c, rows, :].astype(jnp.float32)
                t_c = bt_ref[c, rows, :].astype(jnp.float32)
                t_c = jnp.where(jnp.isnan(t_c), p_c, t_c)
                term = _smooth_l1(jnp.abs(p_c - t_c))
                reg = term if reg is None else reg + term
            # angle: sin(a)cos(b) - cos(a)sin(b) == sin(a - b); NaN targets
            # still propagate to NaN, matching the reference.
            a_p = bp_ref[6, rows, :].astype(jnp.float32)
            a_t = bt_ref[6, rows, :].astype(jnp.float32)
            reg = reg + _smooth_l1(jnp.abs(jnp.sin(a_p - a_t)))

            return (cls_acc + _fold8(cls_per),
                    reg_acc + _fold8(reg * pos),
                    pos_acc + _fold8(pos))

        if ragged:
            # Last tile of the row axis may be partial; only walk valid chunks.
            base_row = pl.program_id(1) * r_tile
            n_chunks = jnp.minimum(r_tile, total_rows - base_row) // chunk
        else:
            n_chunks = static_chunks

        zeros = jnp.zeros((_SUBLANES, _LANES), jnp.float32)
        cls_acc, reg_acc, pos_acc = lax.fori_loop(
            0, n_chunks, body, (zeros, zeros, zeros))

        ocls_ref[...] = cls_acc
        oreg_ref[...] = reg_acc
        opos_ref[...] = pos_acc

    return kernel


def point_pillar_loss(psm, rm, targets, pos_equal_one,
                      cls_weight=CLS_WEIGHT, reg_coe=REG_COE,
                      feed_dtype=jnp.bfloat16, chunk=64, max_tile_rows=4096):
    B, A, H, W = psm.shape
    N = A * H * W
    assert rm.shape == (B, 7 * A, H, W)
    assert targets.shape == (B, H, W, 7 * A)
    assert pos_equal_one.shape == (B, H, W, A)

    feed_dtype = np.dtype(feed_dtype)
    itemsize = feed_dtype.itemsize
    approx_recip = feed_dtype != np.dtype(np.float32)

    # ---- host glue: a-major anchor ordering (n = a*H*W + h*W + w) ----------
    # psm: pure reshape; rm: cheap leading (A,7) swap; targets: the one
    # unavoidable minor-dim transpose. Cast to feed_dtype first so the copies
    # move half the bytes.
    cls_flat = psm.astype(feed_dtype).reshape(B, N)
    lab_flat = jnp.transpose(pos_equal_one.astype(feed_dtype),
                             (0, 3, 1, 2)).reshape(B, N)
    box_p = jnp.transpose(rm.astype(feed_dtype).reshape(B, A, 7, H, W),
                          (0, 2, 1, 3, 4)).reshape(B, 7, N)
    box_t = jnp.transpose(targets.astype(feed_dtype).reshape(B, H, W, A, 7),
                          (0, 4, 3, 1, 2)).reshape(B, 7, N)
    # TODO(synk): produce these layouts upstream to drop the transposes entirely.

    # ---- generation-aware tiling -------------------------------------------
    N_pad = _round_up(N, chunk * _LANES)          # pad only to an 8k-anchor boundary
    R0 = N_pad // _LANES                          # rows of 128 anchors (mult of chunk)

    try:
        vmem_cap = int(pltpu.get_tpu_info().vmem_capacity_bytes)
    except Exception:
        vmem_cap = 64 * 1024 * 1024               # conservative (v7x-sized) fallback
    vmem_limit = max(32 << 20, min(vmem_cap * 3 // 4, 100 << 20))

    per_row_2buf = 2 * 16 * _LANES * itemsize     # double-buffered cls+lab+7bp+7bt
    r_cap = int(vmem_limit * 0.55) // per_row_2buf
    r_cap = max(chunk, min(max_tile_rows, (r_cap // chunk) * chunk))
    n_t = pl.cdiv(R0, r_cap)
    r_tile = _round_up(pl.cdiv(R0, n_t), chunk)   # balanced tiles, multiple of chunk
    n_t = pl.cdiv(R0, r_tile)                     # re-derive: last tile never empty

    pad = N_pad - N
    cls_p = jnp.pad(cls_flat, ((0, 0), (0, pad))).reshape(B, R0, _LANES)
    lab_p = jnp.pad(lab_flat, ((0, 0), (0, pad)),
                    constant_values=-1.0).reshape(B, R0, _LANES)   # -1 = ignore
    bp_p = jnp.pad(box_p, ((0, 0), (0, 0), (0, pad))).reshape(B, 7, R0, _LANES)
    bt_p = jnp.pad(box_t, ((0, 0), (0, 0), (0, pad))).reshape(B, 7, R0, _LANES)

    kernel = _build_kernel(r_tile, chunk, R0, approx_recip)

    acc_shape = jax.ShapeDtypeStruct((B, n_t, _SUBLANES, _LANES), jnp.float32)
    acc_spec = pl.BlockSpec((None, None, _SUBLANES, _LANES),
                            lambda b, t: (b, t, 0, 0))

    out_cls, out_reg, out_pos = pl.pallas_call(
        kernel,
        out_shape=(acc_shape, acc_shape, acc_shape),
        grid_spec=pltpu.PrefetchScalarGridSpec(
            num_scalar_prefetch=0,
            grid=(B, n_t),
            in_specs=[
                pl.BlockSpec((None, r_tile, _LANES), lambda b, t: (b, t, 0)),
                pl.BlockSpec((None, r_tile, _LANES), lambda b, t: (b, t, 0)),
                pl.BlockSpec((None, 7, r_tile, _LANES), lambda b, t: (b, 0, t, 0)),
                pl.BlockSpec((None, 7, r_tile, _LANES), lambda b, t: (b, 0, t, 0)),
            ],
            out_specs=[acc_spec, acc_spec, acc_spec],
        ),
        compiler_params=pltpu.CompilerParams(
            dimension_semantics=("parallel", "parallel"),
            vmem_limit_bytes=int(vmem_limit)),
    )(cls_p, lab_p, bp_p, bt_p)

    # ---- cheap scalar finish in plain JAX -----------------------------------
    cls_sum = jnp.sum(out_cls, axis=(1, 2, 3))
    reg_sum = jnp.sum(out_reg, axis=(1, 2, 3))
    pos_cnt = jnp.sum(out_pos, axis=(1, 2, 3))
    norm = jnp.maximum(pos_cnt, 1.0)                 # clamp(pos_normalizer, 1)
    cls_loss = jnp.sum(cls_sum / norm) / B
    reg_loss = jnp.sum(reg_sum / norm) / B * reg_coe
    conf_loss = cls_loss * cls_weight
    total = reg_loss + conf_loss
    return total, {"total_loss": total, "reg_loss": reg_loss, "conf_loss": conf_loss}


def _reference(psm, rm, targets, pos_equal_one, cls_weight, reg_coe):
    """Pure-JAX transcription of the torch forward (for verification)."""
    B, A, H, W = psm.shape
    N = H * W * A
    cls_preds = jnp.transpose(psm, (0, 2, 3, 1)).reshape(B, N, 1)
    labels = pos_equal_one.reshape(B, N)
    pos = (labels > 0).astype(jnp.float32)
    neg = (labels == 0).astype(jnp.float32)
    pos_norm = jnp.maximum(jnp.sum(pos, axis=1, keepdims=True), 1.0)
    cls_w = (pos + neg) / pos_norm
    reg_w = pos / pos_norm
    t = (labels.astype(jnp.int32) == 1).astype(jnp.float32)[..., None]
    x = cls_preds
    p = jax.nn.sigmoid(x)
    alpha_w = t * ALPHA + (1 - t) * (1 - ALPHA)
    pt = t * (1 - p) + (1 - t) * p
    bce = jnp.maximum(x, 0.0) - x * t + jnp.log1p(jnp.exp(-jnp.abs(x)))
    cls_loss = (alpha_w * pt ** 2 * bce * cls_w[..., None]).sum() / B
    conf_loss = cls_loss * cls_weight

    bp = jnp.transpose(rm, (0, 2, 3, 1)).reshape(B, N, 7)
    bt = targets.reshape(B, N, 7)
    bp6 = jnp.sin(bp[..., 6:7]) * jnp.cos(bt[..., 6:7])
    bt6 = jnp.cos(bp[..., 6:7]) * jnp.sin(bt[..., 6:7])
    bp = jnp.concatenate([bp[..., :6], bp6], axis=-1)
    bt = jnp.concatenate([bt[..., :6], bt6], axis=-1)
    bt = jnp.where(jnp.isnan(bt), bp, bt)
    n = jnp.abs(bp - bt)
    sl1 = jnp.where(n < BETA, 0.5 * n * n / BETA, n - 0.5 * BETA)
    reg_loss = (sl1 * reg_w[..., None]).sum() / B * reg_coe
    return reg_loss + conf_loss


if __name__ == "__main__":
    key = jax.random.PRNGKey(0)
    B, A, H, W = 2, 2, 16, 16          # anchors per batch: N = 512
    k1, k2, k3, k4 = jax.random.split(key, 4)

    psm = jax.random.normal(k1, (B, A, H, W), dtype=jnp.float32)          # cls logit map
    rm = jax.random.normal(k2, (B, 7 * A, H, W), dtype=jnp.float32)       # box regression map
    targets = jax.random.normal(k3, (B, H, W, 7 * A), dtype=jnp.float32)  # regression targets
    # exercise the isnan(target) -> use-prediction path on a non-angle code
    targets = targets.at[:, 0, 0, 2].set(jnp.nan)
    pos_equal_one = (jax.random.uniform(k4, (B, H, W, A)) < 0.1).astype(jnp.float32)

    ref = jax.block_until_ready(
        _reference(psm, rm, targets, pos_equal_one, CLS_WEIGHT, REG_COE))

    # f32 feed path: bit-faithful to the module (exact reciprocal), tight check.
    loss_f32 = jax.jit(functools.partial(point_pillar_loss, feed_dtype=jnp.float32))
    tot32, _ = loss_f32(psm, rm, targets, pos_equal_one)
    tot32 = jax.block_until_ready(tot32)
    assert np.allclose(np.asarray(tot32), np.asarray(ref), rtol=1e-4, atol=1e-5), (
        float(tot32), float(ref))

    # default bf16 feed path (the fast one): looser check for input quantization.
    loss_bf16 = jax.jit(point_pillar_loss)
    tot16, loss_dict = loss_bf16(psm, rm, targets, pos_equal_one)
    tot16 = jax.block_until_ready(tot16)
    assert np.allclose(np.asarray(tot16), np.asarray(ref), rtol=2e-2, atol=1e-3), (
        float(tot16), float(ref))

    print("KERNEL_OK")
</pallas_src>

<mosaic_0001>
module attributes {stable_mosaic.version = 11 : i64} {
  func.func @kernel(%arg0: i32, %arg1: i32, %arg2: memref<1x64x128xf32, #tpu.memory_space<vmem>>, %arg3: memref<1x64x128xf32, #tpu.memory_space<vmem>>, %arg4: memref<1x7x64x128xf32, #tpu.memory_space<vmem>>, %arg5: memref<1x7x64x128xf32, #tpu.memory_space<vmem>>, %arg6: memref<1x1x8x128xf32, #tpu.memory_space<vmem>>, %arg7: memref<1x1x8x128xf32, #tpu.memory_space<vmem>>, %arg8: memref<1x1x8x128xf32, #tpu.memory_space<vmem>>) attributes {dimension_semantics = [#tpu.dimension_semantics<parallel>, #tpu.dimension_semantics<parallel>], iteration_bounds = array<i64: 2, 1>, scalar_prefetch = 0 : i64, scratch_operands = 0 : i64, tpu.core_type = #tpu.core_type<tc>, window_params = [{transform_indices = @transform_0, window_bounds = array<i64: 1, 64, 128>}, {transform_indices = @transform_1, window_bounds = array<i64: 1, 64, 128>}, {transform_indices = @transform_2, window_bounds = array<i64: 1, 7, 64, 128>}, {transform_indices = @transform_3, window_bounds = array<i64: 1, 7, 64, 128>}, {transform_indices = @transform_4, window_bounds = array<i64: 1, 1, 8, 128>}, {transform_indices = @transform_5, window_bounds = array<i64: 1, 1, 8, 128>}, {transform_indices = @transform_6, window_bounds = array<i64: 1, 1, 8, 128>}]} {
    %cst = arith.constant 0.000000e+00 : f32
    %0 = vector.broadcast %cst : f32 to vector<8x128xf32>
    %c0_i32 = arith.constant 0 : i32
    %c64_i32 = arith.constant 64 : i32
    %1 = arith.muli %c0_i32, %c64_i32 : i32
    %2 = tpu.assume_multiple %1, 64 : i32
    %c0 = arith.constant 0 : index
    %3 = arith.index_cast %2 : i32 to index
    %c0_0 = arith.constant 0 : index
    %4 = vector.load %arg2[%c0, %3, %c0_0] : memref<1x64x128xf32, #tpu.memory_space<vmem>>, vector<1x64x128xf32>
    %5 = vector.shape_cast %4 : vector<1x64x128xf32> to vector<64x128xf32>
    %c0_1 = arith.constant 0 : index
    %6 = arith.index_cast %2 : i32 to index
    %c0_2 = arith.constant 0 : index
    %7 = vector.load %arg3[%c0_1, %6, %c0_2] : memref<1x64x128xf32, #tpu.memory_space<vmem>>, vector<1x64x128xf32>
    %8 = vector.shape_cast %7 : vector<1x64x128xf32> to vector<64x128xf32>
    %cst_3 = arith.constant 0.000000e+00 : f32
    %9 = vector.broadcast %cst_3 : f32 to vector<64x128xf32>
    %10 = arith.cmpf ogt, %8, %9 : vector<64x128xf32>
    %11 = arith.extui %10 : vector<64x128xi1> to vector<64x128xi32>
    %12 = arith.sitofp %11 : vector<64x128xi32> to vector<64x128xf32>
    %cst_4 = arith.constant 0.000000e+00 : f32
    %13 = vector.broadcast %cst_4 : f32 to vector<64x128xf32>
    %14 = arith.cmpf oge, %8, %13 : vector<64x128xf32>
    %15 = arith.extui %14 : vector<64x128xi1> to vector<64x128xi32>
    %16 = arith.sitofp %15 : vector<64x128xi32> to vector<64x128xf32>
    %17 = math.absf %5 : vector<64x128xf32>
    %cst_5 = arith.constant 0.000000e+00 : f32
    %18 = vector.broadcast %cst_5 : f32 to vector<64x128xf32>
    %19 = arith.subf %18, %17 : vector<64x128xf32>
    %20 = math.exp %19 : vector<64x128xf32>
    %cst_6 = arith.constant 0.000000e+00 : f32
    %21 = vector.broadcast %cst_6 : f32 to vector<64x128xf32>
    %22 = arith.maximumf %5, %21 : vector<64x128xf32>
    %23 = arith.mulf %5, %12 : vector<64x128xf32>
    %24 = arith.subf %22, %23 : vector<64x128xf32>
    %25 = math.log1p %20 : vector<64x128xf32>
    %26 = arith.addf %24, %25 : vector<64x128xf32>
    %cst_7 = arith.constant 1.000000e+00 : f32
    %27 = vector.broadcast %cst_7 : f32 to vector<64x128xf32>
    %28 = arith.addf %27, %20 : vector<64x128xf32>
    %29 = tpu.reciprocal %28 : vector<64x128xf32> -> vector<64x128xf32>
    %cst_8 = arith.constant 0.000000e+00 : f32
    %30 = vector.broadcast %cst_8 : f32 to vector<64x128xf32>
    %31 = arith.cmpf oge, %5, %30 : vector<64x128xf32>
    %32 = arith.mulf %20, %29 : vector<64x128xf32>
    %33 = arith.select %31, %29, %32 : vector<64x128xi1>, vector<64x128xf32>
    %cst_9 = arith.constant 1.000000e+00 : f32
    %34 = vector.broadcast %cst_9 : f32 to vector<64x128xf32>
    %35 = arith.subf %34, %33 : vector<64x128xf32>
    %36 = arith.select %10, %35, %33 : vector<64x128xi1>, vector<64x128xf32>
    %cst_10 = arith.constant -5.000000e-01 : f32
    %37 = vector.broadcast %cst_10 : f32 to vector<64x128xf32>
    %38 = arith.mulf %12, %37 : vector<64x128xf32>
    %cst_11 = arith.constant 7.500000e-01 : f32
    %39 = vector.broadcast %cst_11 : f32 to vector<64x128xf32>
    %40 = arith.addf %39, %38 : vector<64x128xf32>
    %41 = arith.mulf %36, %36 : vector<64x128xf32>
    %42 = arith.mulf %40, %41 : vector<64x128xf32>
    %43 = arith.mulf %42, %26 : vector<64x128xf32>
    %44 = arith.mulf %43, %16 : vector<64x128xf32>
    %c0_12 = arith.constant 0 : index
    %c0_13 = arith.constant 0 : index
    %45 = arith.index_cast %2 : i32 to index
    %c0_14 = arith.constant 0 : index
    %46 = vector.load %arg4[%c0_12, %c0_13, %45, %c0_14] : memref<1x7x64x128xf32, #tpu.memory_space<vmem>>, vector<1x1x64x128xf32>
    %47 = vector.shape_cast %46 : vector<1x1x64x128xf32> to vector<64x128xf32>
    %c0_15 = arith.constant 0 : index
    %c0_16 = arith.constant 0 : index
    %48 = arith.index_cast %2 : i32 to index
    %c0_17 = arith.constant 0 : index
    %49 = vector.load %arg5[%c0_15, %c0_16, %48, %c0_17] : memref<1x7x64x128xf32, #tpu.memory_space<vmem>>, vector<1x1x64x128xf32>
    %50 = vector.shape_cast %49 : vector<1x1x64x128xf32> to vector<64x128xf32>
    %51 = arith.cmpf one, %50, %50 : vector<64x128xf32>
    %52 = arith.select %51, %47, %50 : vector<64x128xi1>, vector<64x128xf32>
    %53 = arith.subf %47, %52 : vector<64x128xf32>
    %54 = math.absf %53 : vector<64x128xf32>
    %cst_18 = arith.constant 0.111111112 : f32
    %55 = vector.broadcast %cst_18 : f32 to vector<64x128xf32>
    %56 = arith.cmpf olt, %54, %55 : vector<64x128xf32>
    %cst_19 = arith.constant 4.500000e+00 : f32
    %57 = vector.broadcast %cst_19 : f32 to vector<64x128xf32>
    %58 = arith.mulf %57, %54 : vector<64x128xf32>
    %59 = arith.mulf %58, %54 : vector<64x128xf32>
    %cst_20 = arith.constant 0.055555556 : f32
    %60 = vector.broadcast %cst_20 : f32 to vector<64x128xf32>
    %61 = arith.subf %54, %60 : vector<64x128xf32>
    %62 = arith.select %56, %59, %61 : vector<64x128xi1>, vector<64x128xf32>
    %c0_21 = arith.constant 0 : index
    %c1 = arith.constant 1 : index
    %63 = arith.index_cast %2 : i32 to index
    %c0_22 = arith.constant 0 : index
    %64 = vector.load %arg4[%c0_21, %c1, %63, %c0_22] : memref<1x7x64x128xf32, #tpu.memory_space<vmem>>, vector<1x1x64x128xf32>
    %65 = vector.shape_cast %64 : vector<1x1x64x128xf32> to vector<64x128xf32>
    %c0_23 = arith.constant 0 : index
    %c1_24 = arith.constant 1 : index
    %66 = arith.index_cast %2 : i32 to index
    %c0_25 = arith.constant 0 : index
    %67 = vector.load %arg5[%c0_23, %c1_24, %66, %c0_25] : memref<1x7x64x128xf32, #tpu.memory_space<vmem>>, vector<1x1x64x128xf32>
    %68 = vector.shape_cast %67 : vector<1x1x64x128xf32> to vector<64x128xf32>
    %69 = arith.cmpf one, %68, %68 : vector<64x128xf32>
    %70 = arith.select %69, %65, %68 : vector<64x128xi1>, vector<64x128xf32>
    %71 = arith.subf %65, %70 : vector<64x128xf32>
    %72 = math.absf %71 : vector<64x128xf32>
    %cst_26 = arith.constant 0.111111112 : f32
    %73 = vector.broadcast %cst_26 : f32 to vector<64x128xf32>
    %74 = arith.cmpf olt, %72, %73 : vector<64x128xf32>
    %cst_27 = arith.constant 4.500000e+00 : f32
    %75 = vector.broadcast %cst_27 : f32 to vector<64x128xf32>
    %76 = arith.mulf %75, %72 : vector<64x128xf32>
    %77 = arith.mulf %76, %72 : vector<64x128xf32>
    %cst_28 = arith.constant 0.055555556 : f32
    %78 = vector.broadcast %cst_28 : f32 to vector<64x128xf32>
    %79 = arith.subf %72, %78 : vector<64x128xf32>
    %80 = arith.select %74, %77, %79 : vector<64x128xi1>, vector<64x128xf32>
    %81 = arith.addf %62, %80 : vector<64x128xf32>
    %c0_29 = arith.constant 0 : index
    %c2 = arith.constant 2 : index
    %82 = arith.index_cast %2 : i32 to index
    %c0_30 = arith.constant 0 : index
    %83 = vector.load %arg4[%c0_29, %c2, %82, %c0_30] : memref<1x7x64x128xf32, #tpu.memory_space<vmem>>, vector<1x1x64x128xf32>
    %84 = vector.shape_cast %83 : vector<1x1x64x128xf32> to vector<64x128xf32>
    %c0_31 = arith.constant 0 : index
    %c2_32 = arith.constant 2 : index
    %85 = arith.index_cast %2 : i32 to index
    %c0_33 = arith.constant 0 : index
    %86 = vector.load %arg5[%c0_31, %c2_32, %85, %c0_33] : memref<1x7x64x128xf32, #tpu.memory_space<vmem>>, vector<1x1x64x128xf32>
    %87 = vector.shape_cast %86 : vector<1x1x64x128xf32> to vector<64x128xf32>
    %88 = arith.cmpf one, %87, %87 : vector<64x128xf32>
    %89 = arith.select %88, %84, %87 : vector<64x128xi1>, vector<64x128xf32>
    %90 = arith.subf %84, %89 : vector<64x128xf32>
    %91 = math.absf %90 : vector<64x128xf32>
    %cst_34 = arith.constant 0.111111112 : f32
    %92 = vector.broadcast %cst_34 : f32 to vector<64x128xf32>
    %93 = arith.cmpf olt, %91, %92 : vector<64x128xf32>
    %cst_35 = arith.constant 4.500000e+00 : f32
    %94 = vector.broadcast %cst_35 : f32 to vector<64x128xf32>
    %95 = arith.mulf %94, %91 : vector<64x128xf32>
    %96 = arith.mulf %95, %91 : vector<64x128xf32>
    %cst_36 = arith.constant 0.055555556 : f32
    %97 = vector.broadcast %cst_36 : f32 to vector<64x128xf32>
    %98 = arith.subf %91, %97 : vector<64x128xf32>
    %99 = arith.select %93, %96, %98 : vector<64x128xi1>, vector<64x128xf32>
    %100 = arith.addf %81, %99 : vector<64x128xf32>
    %c0_37 = arith.constant 0 : index
    %c3 = arith.constant 3 : index
    %101 = arith.index_cast %2 : i32 to index
    %c0_38 = arith.constant 0 : index
    %102 = vector.load %arg4[%c0_37, %c3, %101, %c0_38] : memref<1x7x64x128xf32, #tpu.memory_space<vmem>>, vector<1x1x64x128xf32>
    %103 = vector.shape_cast %102 : vector<1x1x64x128xf32> to vector<64x128xf32>
    %c0_39 = arith.constant 0 : index
    %c3_40 = arith.constant 3 : index
    %104 = arith.index_cast %2 : i32 to index
    %c0_41 = arith.constant 0 : index
    %105 = vector.load %arg5[%c0_39, %c3_40, %104, %c0_41] : memref<1x7x64x128xf32, #tpu.memory_space<vmem>>, vector<1x1x64x128xf32>
    %106 = vector.shape_cast %105 : vector<1x1x64x128xf32> to vector<64x128xf32>
    %107 = arith.cmpf one, %106, %106 : vector<64x128xf32>
    %108 = arith.select %107, %103, %106 : vector<64x128xi1>, vector<64x128xf32>
    %109 = arith.subf %103, %108 : vector<64x128xf32>
    %110 = math.absf %109 : vector<64x128xf32>
    %cst_42 = arith.constant 0.111111112 : f32
    %111 = vector.broadcast %cst_42 : f32 to vector<64x128xf32>
    %112 = arith.cmpf olt, %110, %111 : vector<64x128xf32>
    %cst_43 = arith.constant 4.500000e+00 : f32
    %113 = vector.broadcast %cst_43 : f32 to vector<64x128xf32>
    %114 = arith.mulf %113, %110 : vector<64x128xf32>
    %115 = arith.mulf %114, %110 : vector<64x128xf32>
    %cst_44 = arith.constant 0.055555556 : f32
    %116 = vector.broadcast %cst_44 : f32 to vector<64x128xf32>
    %117 = arith.subf %110, %116 : vector<64x128xf32>
    %118 = arith.select %112, %115, %117 : vector<64x128xi1>, vector<64x128xf32>
    %119 = arith.addf %100, %118 : vector<64x128xf32>
    %c0_45 = arith.constant 0 : index
    %c4 = arith.constant 4 : index
    %120 = arith.index_cast %2 : i32 to index
    %c0_46 = arith.constant 0 : index
    %121 = vector.load %arg4[%c0_45, %c4, %120, %c0_46] : memref<1x7x64x128xf32, #tpu.memory_space<vmem>>, vector<1x1x64x128xf32>
    %122 = vector.shape_cast %121 : vector<1x1x64x128xf32> to vector<64x128xf32>
    %c0_47 = arith.constant 0 : index
    %c4_48 = arith.constant 4 : index
    %123 = arith.index_cast %2 : i32 to index
    %c0_49 = arith.constant 0 : index
    %124 = vector.load %arg5[%c0_47, %c4_48, %123, %c0_49] : memref<1x7x64x128xf32, #tpu.memory_space<vmem>>, vector<1x1x64x128xf32>
    %125 = vector.shape_cast %124 : vector<1x1x64x128xf32> to vector<64x128xf32>
    %126 = arith.cmpf one, %125, %125 : vector<64x128xf32>
    %127 = arith.select %126, %122, %125 : vector<64x128xi1>, vector<64x128xf32>
    %128 = arith.subf %122, %127 : vector<64x128xf32>
    %129 = math.absf %128 : vector<64x128xf32>
    %cst_50 = arith.constant 0.111111112 : f32
    %130 = vector.broadcast %cst_50 : f32 to vector<64x128xf32>
    %131 = arith.cmpf olt, %129, %130 : vector<64x128xf32>
    %cst_51 = arith.constant 4.500000e+00 : f32
    %132 = vector.broadcast %cst_51 : f32 to vector<64x128xf32>
    %133 = arith.mulf %132, %129 : vector<64x128xf32>
    %134 = arith.mulf %133, %129 : vector<64x128xf32>
    %cst_52 = arith.constant 0.055555556 : f32
    %135 = vector.broadcast %cst_52 : f32 to vector<64x128xf32>
    %136 = arith.subf %129, %135 : vector<64x128xf32>
    %137 = arith.select %131, %134, %136 : vector<64x128xi1>, vector<64x128xf32>
    %138 = arith.addf %119, %137 : vector<64x128xf32>
    %c0_53 = arith.constant 0 : index
    %c5 = arith.constant 5 : index
    %139 = arith.index_cast %2 : i32 to index
    %c0_54 = arith.constant 0 : index
    %140 = vector.load %arg4[%c0_53, %c5, %139, %c0_54] : memref<1x7x64x128xf32, #tpu.memory_space<vmem>>, vector<1x1x64x128xf32>
    %141 = vector.shape_cast %140 : vector<1x1x64x128xf32> to vector<64x128xf32>
    %c0_55 = arith.constant 0 : index
    %c5_56 = arith.constant 5 : index
    %142 = arith.index_cast %2 : i32 to index
    %c0_57 = arith.constant 0 : index
    %143 = vector.load %arg5[%c0_55, %c5_56, %142, %c0_57] : memref<1x7x64x128xf32, #tpu.memory_space<vmem>>, vector<1x1x64x128xf32>
    %144 = vector.shape_cast %143 : vector<1x1x64x128xf32> to vector<64x128xf32>
    %145 = arith.cmpf one, %144, %144 : vector<64x128xf32>
    %146 = arith.select %145, %141, %144 : vector<64x128xi1>, vector<64x128xf32>
    %147 = arith.subf %141, %146 : vector<64x128xf32>
    %148 = math.absf %147 : vector<64x128xf32>
    %cst_58 = arith.constant 0.111111112 : f32
    %149 = vector.broadcast %cst_58 : f32 to vector<64x128xf32>
    %150 = arith.cmpf olt, %148, %149 : vector<64x128xf32>
    %cst_59 = arith.constant 4.500000e+00 : f32
    %151 = vector.broadcast %cst_59 : f32 to vector<64x128xf32>
    %152 = arith.mulf %151, %148 : vector<64x128xf32>
    %153 = arith.mulf %152, %148 : vector<64x128xf32>
    %cst_60 = arith.constant 0.055555556 : f32
    %154 = vector.broadcast %cst_60 : f32 to vector<64x128xf32>
    %155 = arith.subf %148, %154 : vector<64x128xf32>
    %156 = arith.select %150, %153, %155 : vector<64x128xi1>, vector<64x128xf32>
    %157 = arith.addf %138, %156 : vector<64x128xf32>
    %c0_61 = arith.constant 0 : index
    %c6 = arith.constant 6 : index
    %158 = arith.index_cast %2 : i32 to index
    %c0_62 = arith.constant 0 : index
    %159 = vector.load %arg4[%c0_61, %c6, %158, %c0_62] : memref<1x7x64x128xf32, #tpu.memory_space<vmem>>, vector<1x1x64x128xf32>
    %160 = vector.shape_cast %159 : vector<1x1x64x128xf32> to vector<64x128xf32>
    %c0_63 = arith.constant 0 : index
    %c6_64 = arith.constant 6 : index
    %161 = arith.index_cast %2 : i32 to index
    %c0_65 = arith.constant 0 : index
    %162 = vector.load %arg5[%c0_63, %c6_64, %161, %c0_65] : memref<1x7x64x128xf32, #tpu.memory_space<vmem>>, vector<1x1x64x128xf32>
    %163 = vector.shape_cast %162 : vector<1x1x64x128xf32> to vector<64x128xf32>
    %164 = arith.subf %160, %163 : vector<64x128xf32>
    %165 = math.sin %164 : vector<64x128xf32>
    %166 = math.absf %165 : vector<64x128xf32>
    %cst_66 = arith.constant 0.111111112 : f32
    %167 = vector.broadcast %cst_66 : f32 to vector<64x128xf32>
    %168 = arith.cmpf olt, %166, %167 : vector<64x128xf32>
    %cst_67 = arith.constant 4.500000e+00 : f32
    %169 = vector.broadcast %cst_67 : f32 to vector<64x128xf32>
    %170 = arith.mulf %169, %166 : vector<64x128xf32>
    %171 = arith.mulf %170, %166 : vector<64x128xf32>
    %cst_68 = arith.constant 0.055555556 : f32
    %172 = vector.broadcast %cst_68 : f32 to vector<64x128xf32>
    %173 = arith.subf %166, %172 : vector<64x128xf32>
    %174 = arith.select %168, %171, %173 : vector<64x128xi1>, vector<64x128xf32>
    %175 = arith.addf %157, %174 : vector<64x128xf32>
    %176 = vector.shape_cast %44 : vector<64x128xf32> to vector<8x8x128xf32>
    %cst_69 = arith.constant dense<0.000000e+00> : vector<8x128xf32>
    %177 = vector.multi_reduction <add>, %176, %cst_69 [0] : vector<8x8x128xf32> to vector<8x128xf32>
    %178 = arith.addf %0, %177 : vector<8x128xf32>
    %179 = arith.mulf %175, %12 : vector<64x128xf32>
    %180 = vector.shape_cast %179 : vector<64x128xf32> to vector<8x8x128xf32>
    %cst_70 = arith.constant dense<0.000000e+00> : vector<8x128xf32>
    %181 = vector.multi_reduction <add>, %180, %cst_70 [0] : vector<8x8x128xf32> to vector<8x128xf32>
    %182 = arith.addf %0, %181 : vector<8x128xf32>
    %183 = vector.shape_cast %12 : vector<64x128xf32> to vector<8x8x128xf32>
    %cst_71 = arith.constant dense<0.000000e+00> : vector<8x128xf32>
    %184 = vector.multi_reduction <add>, %183, %cst_71 [0] : vector<8x8x128xf32> to vector<8x128xf32>
    %185 = arith.addf %0, %184 : vector<8x128xf32>
    %c1_i32 = arith.constant 1 : i32
    %c0_72 = arith.constant 0 : index
    %c0_73 = arith.constant 0 : index
    %c0_74 = arith.constant 0 : index
    %c0_75 = arith.constant 0 : index
    %186 = vector.load %arg6[%c0_72, %c0_73, %c0_74, %c0_75] : memref<1x1x8x128xf32, #tpu.memory_space<vmem>>, vector<1x1x8x128xf32>
    %187 = vector.shape_cast %186 : vector<1x1x8x128xf32> to vector<8x128xf32>
    %188 = vector.shape_cast %178 : vector<8x128xf32> to vector<1x1x8x128xf32>
    tpu.vector_store %arg6[%c0_72, %c0_73, %c0_74, %c0_75], %188 {strides = array<i32>} : memref<1x1x8x128xf32, #tpu.memory_space<vmem>>, vector<1x1x8x128xf32>,
    %c0_76 = arith.constant 0 : index
    %c0_77 = arith.constant 0 : index
    %c0_78 = arith.constant 0 : index
    %c0_79 = arith.constant 0 : index
    %189 = vector.load %arg7[%c0_76, %c0_77, %c0_78, %c0_79] : memref<1x1x8x128xf32, #tpu.memory_space<vmem>>, vector<1x1x8x128xf32>
    %190 = vector.shape_cast %189 : vector<1x1x8x128xf32> to vector<8x128xf32>
    %191 = vector.shape_cast %182 : vector<8x128xf32> to vector<1x1x8x128xf32>
    tpu.vector_store %arg7[%c0_76, %c0_77, %c0_78, %c0_79], %191 {strides = array<i32>} : memref<1x1x8x128xf32, #tpu.memory_space<vmem>>, vector<1x1x8x128xf32>,
    %c0_80 = arith.constant 0 : index
    %c0_81 = arith.constant 0 : index
    %c0_82 = arith.constant 0 : index
    %c0_83 = arith.constant 0 : index
    %192 = vector.load %arg8[%c0_80, %c0_81, %c0_82, %c0_83] : memref<1x1x8x128xf32, #tpu.memory_space<vmem>>, vector<1x1x8x128xf32>
    %193 = vector.shape_cast %192 : vector<1x1x8x128xf32> to vector<8x128xf32>
    %194 = vector.shape_cast %185 : vector<8x128xf32> to vector<1x1x8x128xf32>
    tpu.vector_store %arg8[%c0_80, %c0_81, %c0_82, %c0_83], %194 {strides = array<i32>} : memref<1x1x8x128xf32, #tpu.memory_space<vmem>>, vector<1x1x8x128xf32>,
    return
  }
  func.func @transform_0(%arg0: i32, %arg1: i32) -> (i32, i32, i32) {
    %c0_i32 = arith.constant 0 : i32
    %c0_i32_0 = arith.constant 0 : i32
    return %arg0, %arg1, %c0_i32 : i32, i32, i32
  }
  func.func @transform_1(%arg0: i32, %arg1: i32) -> (i32, i32, i32) {
    %c0_i32 = arith.constant 0 : i32
    %c0_i32_0 = arith.constant 0 : i32
    return %arg0, %arg1, %c0_i32 : i32, i32, i32
  }
  func.func @transform_2(%arg0: i32, %arg1: i32) -> (i32, i32, i32, i32) {
    %c0_i32 = arith.constant 0 : i32
    %c0_i32_0 = arith.constant 0 : i32
    %c0_i32_1 = arith.constant 0 : i32
    return %arg0, %c0_i32, %arg1, %c0_i32_0 : i32, i32, i32, i32
  }
  func.func @transform_3(%arg0: i32, %arg1: i32) -> (i32, i32, i32, i32) {
    %c0_i32 = arith.constant 0 : i32
    %c0_i32_0 = arith.constant 0 : i32
    %c0_i32_1 = arith.constant 0 : i32
    return %arg0, %c0_i32, %arg1, %c0_i32_0 : i32, i32, i32, i32
  }
  func.func @transform_4(%arg0: i32, %arg1: i32) -> (i32, i32, i32, i32) {
    %c0_i32 = arith.constant 0 : i32
    %c0_i32_0 = arith.constant 0 : i32
    %c0_i32_1 = arith.constant 0 : i32
    return %arg0, %arg1, %c0_i32, %c0_i32_0 : i32, i32, i32, i32
  }
  func.func @transform_5(%arg0: i32, %arg1: i32) -> (i32, i32, i32, i32) {
    %c0_i32 = arith.constant 0 : i32
    %c0_i32_0 = arith.constant 0 : i32
    %c0_i32_1 = arith.constant 0 : i32
    return %arg0, %arg1, %c0_i32, %c0_i32_0 : i32, i32, i32, i32
  }
  func.func @transform_6(%arg0: i32, %arg1: i32) -> (i32, i32, i32, i32) {
    %c0_i32 = arith.constant 0 : i32
    %c0_i32_0 = arith.constant 0 : i32
    %c0_i32_1 = arith.constant 0 : i32
    return %arg0, %arg1, %c0_i32, %c0_i32_0 : i32, i32, i32, i32
  }
}

</mosaic_0001>

<llo_original>
// kernel: point_pillar_loss.1
$region0: #{point_pillar_loss.1}
  #allocation0 [shape = 'u32[]', space=smem, size = 0x4, offset = 0x4, fixed_abs, tag = 'smem constant byte address 0x4 - core index']
  #allocation1 [shape = 'u32[144,128]{1,0:T(1,128)}', space=vmem, size = 0x12000, scoped, tag = 'internal scratch']
  %s0 = inlined_call_operand.vmem [shape: f32[2,64,128], index: 0, kind: input, shape index: {}]
  %s1 = inlined_call_operand.vmem [shape: f32[2,64,128], index: 1, kind: input, shape index: {}]
  %s2 = inlined_call_operand.vmem [shape: f32[2,7,64,128], index: 2, kind: input, shape index: {}]
  %s3 = inlined_call_operand.vmem [shape: f32[2,7,64,128], index: 3, kind: input, shape index: {}]
  %s4 = inlined_call_operand.vmem [shape: f32[2,1,8,128], index: 4, kind: output, shape index: {0}]
  %s5 = inlined_call_operand.vmem [shape: f32[2,1,8,128], index: 5, kind: output, shape index: {1}]
  %s6 = inlined_call_operand.vmem [shape: f32[2,1,8,128], index: 6, kind: output, shape index: {2}]
  %7 = xla_tuple %s4, %s5, %s6
  %s8 = sld [smem:[#allocation0]]
  $region65: #{point_pillar_loss.1} parent=0
    _
  %s10 = ssub.s32 1, %s8
  %s11 = scalar_select 0, %s10, %s8
  loop: start=0, step=1, limit=4
  $region2: #{point_pillar_loss.1} parent=0 // loop_pre_header
    _
  $region3: #{point_pillar_loss.1} parent=0 // loop_header
    %s13 = sphi 0, %s17
    %p14 = scmp.ge.s32.totalorder %s13, 4
    %s20 = sphi 0, %s32
    %s21 = sphi 0, %s28
    %s22 = sphi 0, %s20
    %s23 = sphi 0, %s21
    %s24 = sphi 0, %s22
    %s25 = sphi 0, %s23
    %s37 = sphi 0, %s39
    %s40 = sphi 0, %s37
    %s41 = sphi 0, %s40
    %s57 = sphi 0, %s41
    %s65 = sphi 0, %s67
    %s68 = sphi 0, %s65
    %s69 = sphi 0, %s68
    %s85 = sphi 0, %s69
    %s93 = sphi 0, %s95
    %s96 = sphi 0, %s93
    %s97 = sphi 0, %s96
    %s113 = sphi 0, %s97
    %s121 = sphi 0, %s123
    %s124 = sphi 0, %s121
    %s125 = sphi 0, %s124
    %s141 = sphi 0, %s125
    %s149 = sphi 0, %s151
    %s152 = sphi 0, %s149
    %s153 = sphi 0, %s152
    %s169 = sphi 0, %s153
    %s177 = sphi 0, %s179
    %s180 = sphi 0, %s177
    %s181 = sphi 0, %s180
    %s197 = sphi 0, %s181
    %s205 = sphi 0, %s207
    %s208 = sphi 0, %s205
    %s209 = sphi 0, %s208
    %s225 = sphi 0, %s209
  $region4: #{point_pillar_loss.1} parent=0 // loop_header_branch
    %16 = sbr.rel (%p14) target = $region8
  $region5: #{point_pillar_loss.1} parent=0 // loop_body
    %s18 = ssub.s32 %s13, 1
    %s19 = ssub.s32 %s13, 2
    %s26 = sadd.s32 1, %s21
    %p27 = scmp.ge.s32.totalorder %s26, 1
    %s28 = scalar_select %p27, 0, %s26
    %s29 = sadd.s32 1, %s20
    %s30 = scalar_select %p27, %s29, %s20
    %p31 = scmp.ge.s32.totalorder %s30, 2
    %s32 = scalar_select %p31, 0, %s30
    %s33 = ssub.s32 %s20, %s32
    %s34 = ssub.s32 %s21, %s28
    %s35 = sor.u32 %s33, %s34
    %p36 = scmp.eq.s32.totalorder %s35, 0
    %s38 = sadd.s32 %s37, 1
    %s39 = scalar_select %p36, %s37, %s38
    %p42 = pneg %p36
    %p43 = scmp.eq.s32.totalorder %s13, 1
    %p44 = por %p42, %p43
    %p45 = scmp.ne.s32.totalorder %s37, %s40
    %p46 = scmp.eq.s32.totalorder %s13, 0
    %p47 = por %p45, %p46
    %p48 = scmp.ne.s32.totalorder %s37, %s40
    %p49 = scmp.eq.s32.totalorder %s18, 1
    %p50 = por %p48, %p49
    %p51 = scmp.ne.s32.totalorder %s40, %s41
    %p52 = scmp.eq.s32.totalorder %s18, 0
    %p53 = por %p51, %p52
    %p54 = scmp.ne.s32.totalorder %s40, %s41
    %p55 = scmp.eq.s32.totalorder %s19, 1
    %p56 = por %p54, %p55
    %p58 = scmp.ne.s32.totalorder %s41, %s57
    %p59 = scmp.eq.s32.totalorder %s19, 0
    %p60 = por %p58, %p59
    %s61 = ssub.s32 %s20, %s32
    %s62 = ssub.s32 %s21, %s28
    %s63 = sor.u32 %s61, %s62
    %p64 = scmp.eq.s32.totalorder %s63, 0
    %s66 = sadd.s32 %s65, 1
    %s67 = scalar_select %p64, %s65, %s66
    %p70 = pneg %p64
    %p71 = scmp.eq.s32.totalorder %s13, 1
    %p72 = por %p70, %p71
    %p73 = scmp.ne.s32.totalorder %s65, %s68
    %p74 = scmp.eq.s32.totalorder %s13, 0
    %p75 = por %p73, %p74
    %p76 = scmp.ne.s32.totalorder %s65, %s68
    %p77 = scmp.eq.s32.totalorder %s18, 1
    %p78 = por %p76, %p77
    %p79 = scmp.ne.s32.totalorder %s68, %s69
    %p80 = scmp.eq.s32.totalorder %s18, 0
    %p81 = por %p79, %p80
    %p82 = scmp.ne.s32.totalorder %s68, %s69
    %p83 = scmp.eq.s32.totalorder %s19, 1
    %p84 = por %p82, %p83
    %p86 = scmp.ne.s32.totalorder %s69, %s85
    %p87 = scmp.eq.s32.totalorder %s19, 0
    %p88 = por %p86, %p87
    %s89 = ssub.s32 %s20, %s32
    %s90 = ssub.s32 %s21, %s28
    %s91 = sor.u32 %s89, %s90
    %p92 = scmp.eq.s32.totalorder %s91, 0
    %s94 = sadd.s32 %s93, 1
    %s95 = scalar_select %p92, %s93, %s94
    %p98 = pneg %p92
    %p99 = scmp.eq.s32.totalorder %s13, 1
    %p100 = por %p98, %p99
    %p101 = scmp.ne.s32.totalorder %s93, %s96
    %p102 = scmp.eq.s32.totalorder %s13, 0
    %p103 = por %p101, %p102
    %p104 = scmp.ne.s32.totalorder %s93, %s96
    %p105 = scmp.eq.s32.totalorder %s18, 1
    %p106 = por %p104, %p105
    %p107 = scmp.ne.s32.totalorder %s96, %s97
    %p108 = scmp.eq.s32.totalorder %s18, 0
    %p109 = por %p107, %p108
    %p110 = scmp.ne.s32.totalorder %s96, %s97
    %p111 = scmp.eq.s32.totalorder %s19, 1
    %p112 = por %p110, %p111
    %p114 = scmp.ne.s32.totalorder %s97, %s113
    %p115 = scmp.eq.s32.totalorder %s19, 0
    %p116 = por %p114, %p115
    %s117 = ssub.s32 %s20, %s32
    %s118 = ssub.s32 %s21, %s28
    %s119 = sor.u32 %s117, %s118
    %p120 = scmp.eq.s32.totalorder %s119, 0
    %s122 = sadd.s32 %s121, 1
    %s123 = scalar_select %p120, %s121, %s122
    %p126 = pneg %p120
    %p127 = scmp.eq.s32.totalorder %s13, 1
    %p128 = por %p126, %p127
    %p129 = scmp.ne.s32.totalorder %s121, %s124
    %p130 = scmp.eq.s32.totalorder %s13, 0
    %p131 = por %p129, %p130
    %p132 = scmp.ne.s32.totalorder %s121, %s124
    %p133 = scmp.eq.s32.totalorder %s18, 1
    %p134 = por %p132, %p133
    %p135 = scmp.ne.s32.totalorder %s124, %s125
    %p136 = scmp.eq.s32.totalorder %s18, 0
    %p137 = por %p135, %p136
    %p138 = scmp.ne.s32.totalorder %s124, %s125
    %p139 = scmp.eq.s32.totalorder %s19, 1
    %p140 = por %p138, %p139
    %p142 = scmp.ne.s32.totalorder %s125, %s141
    %p143 = scmp.eq.s32.totalorder %s19, 0
    %p144 = por %p142, %p143
    %s145 = ssub.s32 %s20, %s32
    %s146 = ssub.s32 %s21, %s28
    %s147 = sor.u32 %s145, %s146
    %p148 = scmp.eq.s32.totalorder %s147, 0
    %s150 = sadd.s32 %s149, 1
    %s151 = scalar_select %p148, %s149, %s150
    %p154 = pneg %p148
    %p155 = scmp.eq.s32.totalorder %s13, 1
    %p156 = por %p154, %p155
    %p157 = scmp.ne.s32.totalorder %s149, %s152
    %p158 = scmp.eq.s32.totalorder %s13, 0
    %p159 = por %p157, %p158
    %p160 = scmp.ne.s32.totalorder %s149, %s152
    %p161 = scmp.eq.s32.totalorder %s18, 1
    %p162 = por %p160, %p161
    %p163 = scmp.ne.s32.totalorder %s152, %s153
    %p164 = scmp.eq.s32.totalorder %s18, 0
    %p165 = por %p163, %p164
    %p166 = scmp.ne.s32.totalorder %s152, %s153
    %p167 = scmp.eq.s32.totalorder %s19, 1
    %p168 = por %p166, %p167
    %p170 = scmp.ne.s32.totalorder %s153, %s169
    %p171 = scmp.eq.s32.totalorder %s19, 0
    %p172 = por %p170, %p171
    %s173 = ssub.s32 %s20, %s32
    %s174 = ssub.s32 %s21, %s28
    %s175 = sor.u32 %s173, %s174
    %p176 = scmp.eq.s32.totalorder %s175, 0
    %s178 = sadd.s32 %s177, 1
    %s179 = scalar_select %p176, %s177, %s178
    %p182 = pneg %p176
    %p183 = scmp.eq.s32.totalorder %s13, 1
    %p184 = por %p182, %p183
    %p185 = scmp.ne.s32.totalorder %s177, %s180
    %p186 = scmp.eq.s32.totalorder %s13, 0
    %p187 = por %p185, %p186
    %p188 = scmp.ne.s32.totalorder %s177, %s180
    %p189 = scmp.eq.s32.totalorder %s18, 1
    %p190 = por %p188, %p189
    %p191 = scmp.ne.s32.totalorder %s180, %s181
    %p192 = scmp.eq.s32.totalorder %s18, 0
    %p193 = por %p191, %p192
    %p194 = scmp.ne.s32.totalorder %s180, %s181
    %p195 = scmp.eq.s32.totalorder %s19, 1
    %p196 = por %p194, %p195
    %p198 = scmp.ne.s32.totalorder %s181, %s197
    %p199 = scmp.eq.s32.totalorder %s19, 0
    %p200 = por %p198, %p199
    %s201 = ssub.s32 %s20, %s32
    %s202 = ssub.s32 %s21, %s28
    %s203 = sor.u32 %s201, %s202
    %p204 = scmp.eq.s32.totalorder %s203, 0
    %s206 = sadd.s32 %s205, 1
    %s207 = scalar_select %p204, %s205, %s206
    %p210 = pneg %p204
    %p211 = scmp.eq.s32.totalorder %s13, 1
    %p212 = por %p210, %p211
    %p213 = scmp.ne.s32.totalorder %s205, %s208
    %p214 = scmp.eq.s32.totalorder %s13, 0
    %p215 = por %p213, %p214
    %p216 = scmp.ne.s32.totalorder %s205, %s208
    %p217 = scmp.eq.s32.totalorder %s18, 1
    %p218 = por %p216, %p217
    %p219 = scmp.ne.s32.totalorder %s208, %s209
    %p220 = scmp.eq.s32.totalorder %s18, 0
    %p221 = por %p219, %p220
    %p222 = scmp.ne.s32.totalorder %s208, %s209
    %p223 = scmp.eq.s32.totalorder %s19, 1
    %p224 = por %p222, %p223
    %p226 = scmp.ne.s32.totalorder %s209, %s225
    %p227 = scmp.eq.s32.totalorder %s19, 0
    %p228 = por %p226, %p227
    %p229 = scmp.le.s32.totalorder 1, %s13
    %p230 = scmp.lt.s32.totalorder %s13, 3
    %p231 = pnand %p229, %p230
    %p232 = pneg %p231
    // Predicated region
    $region9: #{point_pillar_loss.1} parent=5 // pred_check
      _
    $region10: #{point_pillar_loss.1} parent=5 // pred_check_branch
      %234 = sbr.rel (%p231) target = $region12
    $region11: #{point_pillar_loss.1} parent=5 // pred_region
      %s235 = ssub.s32 %s13, 1
    $region12: #{point_pillar_loss.1} parent=5 // pred_fallthru
      _
    %p236 = scmp.lt.s32.totalorder %s13, 2
    // Predicated region
    $region13: #{point_pillar_loss.1} parent=5 // pred_check
      %p237 = pneg %p236
    $region14: #{point_pillar_loss.1} parent=5 // pred_check_branch
      %239 = sbr.rel (%p237) target = $region16
    $region15: #{point_pillar_loss.1} parent=5 // pred_region
      // Predicated region
      $region17: #{point_pillar_loss.1} parent=15 // pred_check
        %p240 = pneg %p47
      $region18: #{point_pillar_loss.1} parent=15 // pred_check_branch
        %242 = sbr.rel (%p240) target = $region20
      $region19: #{point_pillar_loss.1} parent=15 // pred_region
        %s243 = smul.u32 8, %s21
        %p244 = scmp.lt.s32.totalorder %s20, 1
        %s245 = scalar_select %p244, %s20, 1
        %p246 = scmp.lt.s32.totalorder %s243, 7
        %s247 = scalar_select %p246, %s243, 7
        %s248 = smul.addr %s245, 8
        %s249 = sadd.s32 %s247, %s248
        %s250 = smul.addr %s249, 8
        %s251 = scalar_lea.vmem %s0, %s250
        %s252 = smul.u32 8, %s21
      $region20: #{point_pillar_loss.1} parent=15 // pred_fallthru
        _
      // Predicated region
      $region21: #{point_pillar_loss.1} parent=15 // pred_check
        %p253 = pneg %p75
      $region22: #{point_pillar_loss.1} parent=15 // pred_check_branch
        %255 = sbr.rel (%p253) target = $region24
      $region23: #{point_pillar_loss.1} parent=15 // pred_region
        %s256 = smul.u32 8, %s21
        %p257 = scmp.lt.s32.totalorder %s20, 1
        %s258 = scalar_select %p257, %s20, 1
        %p259 = scmp.lt.s32.totalorder %s256, 7
        %s260 = scalar_select %p259, %s256, 7
        %s261 = smul.addr %s258, 8
        %s262 = sadd.s32 %s260, %s261
        %s263 = smul.addr %s262, 8
        %s264 = scalar_lea.vmem %s1, %s263
        %s265 = smul.u32 8, %s21
      $region24: #{point_pillar_loss.1} parent=15 // pred_fallthru
        _
      // Predicated region
      $region25: #{point_pillar_loss.1} parent=15 // pred_check
        %p266 = pneg %p103
      $region26: #{point_pillar_loss.1} parent=15 // pred_check_branch
        %268 = sbr.rel (%p266) target = $region28
      $region27: #{point_pillar_loss.1} parent=15 // pred_region
        %s269 = smul.u32 8, %s21
        %p270 = scmp.lt.s32.totalorder %s20, 1
        %s271 = scalar_select %p270, %s20, 1
        %p272 = scmp.lt.s32.totalorder %s269, 7
        %s273 = scalar_select %p272, %s269, 7
        %s274 = smul.addr %s271, 56
        %s275 = sadd.s32 %s273, %s274
        %s276 = smul.addr %s275, 8
        %s277 = scalar_lea.vmem %s2, %s276
        %s278 = smul.u32 8, %s21
      $region28: #{point_pillar_loss.1} parent=15 // pred_fallthru
        _
      // Predicated region
      $region29: #{point_pillar_loss.1} parent=15 // pred_check
        %p279 = pneg %p131
      $region30: #{point_pillar_loss.1} parent=15 // pred_check_branch
        %281 = sbr.rel (%p279) target = $region32
      $region31: #{point_pillar_loss.1} parent=15 // pred_region
        %s282 = smul.u32 8, %s21
        %p283 = scmp.lt.s32.totalorder %s20, 1
        %s284 = scalar_select %p283, %s20, 1
        %p285 = scmp.lt.s32.totalorder %s282, 7
        %s286 = scalar_select %p285, %s282, 7
        %s287 = smul.addr %s284, 56
        %s288 = sadd.s32 %s286, %s287
        %s289 = smul.addr %s288, 8
        %s290 = scalar_lea.vmem %s3, %s289
        %s291 = smul.u32 8, %s21
      $region32: #{point_pillar_loss.1} parent=15 // pred_fallthru
        _
    $region16: #{point_pillar_loss.1} parent=5 // pred_fallthru
      _
    %p292 = scmp.le.s32.totalorder 1, %s13
    %p293 = scmp.lt.s32.totalorder %s13, 3
    %p294 = pnand %p292, %p293
    %p295 = pneg %p294
    // Predicated region
    $region33: #{point_pillar_loss.1} parent=5 // pred_check
      _
    $region34: #{point_pillar_loss.1} parent=5 // pred_check_branch
      %297 = sbr.rel (%p294) target = $region36
    $region35: #{point_pillar_loss.1} parent=5 // pred_region
      %s298 = ssub.s32 %s13, 1
      %s299 = smul.u32 8, %s23
      %p300 = scmp.lt.s32.totalorder %s22, 1
      %s301 = scalar_select %p300, %s22, 1
      %p302 = scmp.lt.s32.totalorder %s299, 7
      %s303 = scalar_select %p302, %s299, 7
      %s304 = smul.addr %s301, 8
      %s305 = sadd.s32 %s303, %s304
      %s306 = smul.addr %s305, 8
      %s307 = scalar_lea.vmem %s0, %s306
      %p308 = pneg %p53
      %p309 = pneg %p50
      %s310 = smul.u32 8, %s23
      %p311 = scmp.lt.s32.totalorder %s22, 1
      %s312 = scalar_select %p311, %s22, 1
      %p313 = scmp.lt.s32.totalorder %s310, 7
      %s314 = scalar_select %p313, %s310, 7
      %s315 = smul.addr %s312, 8
      %s316 = sadd.s32 %s314, %s315
      %s317 = smul.addr %s316, 8
      %s318 = scalar_lea.vmem %s1, %s317
      %p319 = pneg %p81
      %p320 = pneg %p78
      %s321 = smul.u32 8, %s23
      %p322 = scmp.lt.s32.totalorder %s22, 1
      %s323 = scalar_select %p322, %s22, 1
      %p324 = scmp.lt.s32.totalorder %s321, 7
      %s325 = scalar_select %p324, %s321, 7
      %s326 = smul.addr %s323, 56
      %s327 = sadd.s32 %s325, %s326
      %s328 = smul.addr %s327, 8
      %s329 = scalar_lea.vmem %s2, %s328
      %p330 = pneg %p109
      %p331 = pneg %p106
      %s332 = smul.u32 8, %s23
      %p333 = scmp.lt.s32.totalorder %s22, 1
      %s334 = scalar_select %p333, %s22, 1
      %p335 = scmp.lt.s32.totalorder %s332, 7
      %s336 = scalar_select %p335, %s332, 7
      %s337 = smul.addr %s334, 56
      %s338 = sadd.s32 %s336, %s337
      %s339 = smul.addr %s338, 8
      %s340 = scalar_lea.vmem %s3, %s339
      %p341 = pneg %p137
      %p342 = pneg %p134
      %p343 = pneg %p165
      %p344 = pneg %p162
      %p345 = scmp.lt.s32.totalorder %s22, 1
      %s346 = scalar_select %p345, %s22, 1
      %p347 = scmp.lt.s32.totalorder %s23, 0
      %s348 = scalar_select %p347, %s23, 0
      %s349 = sadd.s32 %s348, %s346
      %s350 = smul.addr %s349, 8
      %s351 = scalar_lea.vmem %s4, %s350
      %p352 = pneg %p193
      %p353 = pneg %p190
      %p354 = scmp.lt.s32.totalorder %s22, 1
      %s355 = scalar_select %p354, %s22, 1
      %p356 = scmp.lt.s32.totalorder %s23, 0
      %s357 = scalar_select %p356, %s23, 0
      %s358 = sadd.s32 %s357, %s355
      %s359 = smul.addr %s358, 8
      %s360 = scalar_lea.vmem %s5, %s359
      %p361 = pneg %p221
      %p362 = pneg %p218
      %p363 = scmp.lt.s32.totalorder %s22, 1
      %s364 = scalar_select %p363, %s22, 1
      %p365 = scmp.lt.s32.totalorder %s23, 0
      %s366 = scalar_select %p365, %s23, 0
      %s367 = sadd.s32 %s366, %s364
      %s368 = smul.addr %s367, 8
      %s369 = scalar_lea.vmem %s6, %s368
      %s370 = smul.u32 8, %s23
      %p371 = scmp.lt.s32.totalorder %s22, 1
      %s372 = scalar_select %p371, %s22, 1
      %p373 = scmp.lt.s32.totalorder %s370, 7
      %s374 = scalar_select %p373, %s370, 7
      %s375 = smul.addr %s372, 8
      %s376 = sadd.s32 %s374, %s375
      %s377 = smul.addr %s376, 8
      %s378 = scalar_lea.vmem %s0, %s377
      %s379 = smul.u32 8, %s23
      %s380 = smul.u32 8, %s23
      %p381 = scmp.lt.s32.totalorder %s22, 1
      %s382 = scalar_select %p381, %s22, 1
      %p383 = scmp.lt.s32.totalorder %s380, 7
      %s384 = scalar_select %p383, %s380, 7
      %s385 = smul.addr %s382, 8
      %s386 = sadd.s32 %s384, %s385
      %s387 = smul.addr %s386, 8
      %s388 = scalar_lea.vmem %s1, %s387
      %s389 = smul.u32 8, %s23
      %s390 = smul.u32 8, %s23
      %p391 = scmp.lt.s32.totalorder %s22, 1
      %s392 = scalar_select %p391, %s22, 1
      %p393 = scmp.lt.s32.totalorder %s390, 7
      %s394 = scalar_select %p393, %s390, 7
      %s395 = smul.addr %s392, 56
      %s396 = sadd.s32 %s394, %s395
      %s397 = smul.addr %s396, 8
      %s398 = scalar_lea.vmem %s2, %s397
      %s399 = smul.u32 8, %s23
      %s400 = smul.u32 8, %s23
      %p401 = scmp.lt.s32.totalorder %s22, 1
      %s402 = scalar_select %p401, %s22, 1
      %p403 = scmp.lt.s32.totalorder %s400, 7
      %s404 = scalar_select %p403, %s400, 7
      %s405 = smul.addr %s402, 56
      %s406 = sadd.s32 %s404, %s405
      %s407 = smul.addr %s406, 8
      %s408 = scalar_lea.vmem %s3, %s407
      %s409 = smul.u32 8, %s23
      %p410 = scmp.lt.s32.totalorder %s22, 1
      %s411 = scalar_select %p410, %s22, 1
      %p412 = scmp.lt.s32.totalorder %s23, 0
      %s413 = scalar_select %p412, %s23, 0
      %s414 = sadd.s32 %s413, %s411
      %s415 = smul.addr %s414, 8
      %s416 = scalar_lea.vmem %s4, %s415
      %p417 = scmp.lt.s32.totalorder %s22, 1
      %s418 = scalar_select %p417, %s22, 1
      %p419 = scmp.lt.s32.totalorder %s23, 0
      %s420 = scalar_select %p419, %s23, 0
      %s421 = sadd.s32 %s420, %s418
      %s422 = smul.addr %s421, 8
      %s423 = scalar_lea.vmem %s5, %s422
      %p424 = scmp.lt.s32.totalorder %s22, 1
      %s425 = scalar_select %p424, %s22, 1
      %p426 = scmp.lt.s32.totalorder %s23, 0
      %s427 = scalar_select %p426, %s23, 0
      %s428 = sadd.s32 %s427, %s425
      %s429 = smul.addr %s428, 8
      %s430 = scalar_lea.vmem %s6, %s429
      %v431 = vld [vmem:[%s378] sm:$0xff]
      %v432 = vld [vmem:[%s378 + $0x8] sm:$0xff]
      %v433 = vld [vmem:[%s378 + $0x10] sm:$0xff]
      %v434 = vld [vmem:[%s378 + $0x18] sm:$0xff]
      %v435 = vld [vmem:[%s378 + $0x20] sm:$0xff]
      %v436 = vld [vmem:[%s378 + $0x28] sm:$0xff]
      %v437 = vld [vmem:[%s378 + $0x30] sm:$0xff]
      %v438 = vld [vmem:[%s378 + $0x38] sm:$0xff]
      %v439 = vld [vmem:[%s388] sm:$0xff]
      %v440 = vld [vmem:[%s388 + $0x8] sm:$0xff]
      %v441 = vld [vmem:[%s388 + $0x10] sm:$0xff]
      %v442 = vld [vmem:[%s388 + $0x18] sm:$0xff]
      %v443 = vld [vmem:[%s388 + $0x20] sm:$0xff]
      %v444 = vld [vmem:[%s388 + $0x28] sm:$0xff]
      %v445 = vld [vmem:[%s388 + $0x30] sm:$0xff]
      %v446 = vld [vmem:[%s388 + $0x38] sm:$0xff]
      %vm447 = vcmp.gt.f32.partialorder %v439, 0.0
      %vm448 = vcmp.gt.f32.partialorder %v440, 0.0
      %vm449 = vcmp.gt.f32.partialorder %v441, 0.0
      %vm450 = vcmp.gt.f32.partialorder %v442, 0.0
      %vm451 = vcmp.gt.f32.partialorder %v443, 0.0
      %vm452 = vcmp.gt.f32.partialorder %v444, 0.0
      %vm453 = vcmp.gt.f32.partialorder %v445, 0.0
      %vm454 = vcmp.gt.f32.partialorder %v446, 0.0
      %v455 = vsel %vm447, 1, 0
      %v456 = vsel %vm448, 1, 0
      %v457 = vsel %vm449, 1, 0
      %v458 = vsel %vm450, 1, 0
      %v459 = vsel %vm451, 1, 0
      %v460 = vsel %vm452, 1, 0
      %v461 = vsel %vm453, 1, 0
      %v462 = vsel %vm454, 1, 0
      %v463 = vcvt.s32.f32 %v455
      %v464 = vcvt.s32.f32 %v456
      %v465 = vcvt.s32.f32 %v457
      %v466 = vcvt.s32.f32 %v458
      %v467 = vcvt.s32.f32 %v459
      %v468 = vcvt.s32.f32 %v460
      %v469 = vcvt.s32.f32 %v461
      %v470 = vcvt.s32.f32 %v462
      %vm471 = vcmp.ge.f32.partialorder %v439, 0.0
      %vm472 = vcmp.ge.f32.partialorder %v440, 0.0
      %vm473 = vcmp.ge.f32.partialorder %v441, 0.0
      %vm474 = vcmp.ge.f32.partialorder %v442, 0.0
      %vm475 = vcmp.ge.f32.partialorder %v443, 0.0
      %vm476 = vcmp.ge.f32.partialorder %v444, 0.0
      %vm477 = vcmp.ge.f32.partialorder %v445, 0.0
      %vm478 = vcmp.ge.f32.partialorder %v446, 0.0
      %v479 = vsel %vm471, 1, 0
      %v480 = vsel %vm472, 1, 0
      %v481 = vsel %vm473, 1, 0
      %v482 = vsel %vm474, 1, 0
      %v483 = vsel %vm475, 1, 0
      %v484 = vsel %vm476, 1, 0
      %v485 = vsel %vm477, 1, 0
      %v486 = vsel %vm478, 1, 0
      %v487 = vcvt.s32.f32 %v479
      %v488 = vcvt.s32.f32 %v480
      %v489 = vcvt.s32.f32 %v481
      %v490 = vcvt.s32.f32 %v482
      %v491 = vcvt.s32.f32 %v483
      %v492 = vcvt.s32.f32 %v484
      %v493 = vcvt.s32.f32 %v485
      %v494 = vcvt.s32.f32 %v486
      %v495 = vand.u32 2147483647, %v431
      %v496 = vand.u32 2147483647, %v432
      %v497 = vand.u32 2147483647, %v433
      %v498 = vand.u32 2147483647, %v434
      %v499 = vand.u32 2147483647, %v435
      %v500 = vand.u32 2147483647, %v436
      %v501 = vand.u32 2147483647, %v437
      %v502 = vand.u32 2147483647, %v438
      %v503 = vsub.f32 0.0, %v495
      %v504 = vsub.f32 0.0, %v496
      %v505 = vsub.f32 0.0, %v497
      %v506 = vsub.f32 0.0, %v498
      %v507 = vsub.f32 0.0, %v499
      %v508 = vsub.f32 0.0, %v500
      %v509 = vsub.f32 0.0, %v501
      %v510 = vsub.f32 0.0, %v502
      %v511 = vmul.f32 %v503, 1.442695
      %v512 = vpow.pop %v511
      %v513 = vmul.f32 %v504, 1.442695
      %v514 = vpow.pop %v513
      %v515 = vmul.f32 %v505, 1.442695
      %v516 = vpow.pop %v515
      %v517 = vmul.f32 %v506, 1.442695
      %v518 = vpow.pop %v517
      %v519 = vmul.f32 %v507, 1.442695
      %v520 = vpow.pop %v519
      %v521 = vmul.f32 %v508, 1.442695
      %v522 = vpow.pop %v521
      %v523 = vmul.f32 %v509, 1.442695
      %v524 = vpow.pop %v523
      %v525 = vmul.f32 %v510, 1.442695
      %v526 = vpow.pop %v525
      %v527 = vmax.f32 %v431, 0.0
      %v528 = vmax.f32 %v432, 0.0
      %v529 = vmax.f32 %v433, 0.0
      %v530 = vmax.f32 %v434, 0.0
      %v531 = vmax.f32 %v435, 0.0
      %v532 = vmax.f32 %v436, 0.0
      %v533 = vmax.f32 %v437, 0.0
      %v534 = vmax.f32 %v438, 0.0
      %v535 = vmul.f32 %v431, %v463
      %v536 = vmul.f32 %v432, %v464
      %v537 = vmul.f32 %v433, %v465
      %v538 = vmul.f32 %v434, %v466
      %v539 = vmul.f32 %v435, %v467
      %v540 = vmul.f32 %v436, %v468
      %v541 = vmul.f32 %v437, %v469
      %v542 = vmul.f32 %v438, %v470
      %v543 = vsub.f32 %v527, %v535
      %v544 = vsub.f32 %v528, %v536
      %v545 = vsub.f32 %v529, %v537
      %v546 = vsub.f32 %v530, %v538
      %v547 = vsub.f32 %v531, %v539
      %v548 = vsub.f32 %v532, %v540
      %v549 = vsub.f32 %v533, %v541
      %v550 = vsub.f32 %v534, %v542
      %v551 = vadd.f32 %v512, 1.0
      %v552 = vlog2.pop %v551
      %v553 = vmul.f32 %v552, 0.6931472
      %v554 = vmul.f32 -0.5, %v512
      %v555 = vadd.f32 %v554, 1.0
      %v556 = vmul.f32 %v555, %v512
      %v557 = vand.u32 2147483647, %v512
      %vm558 = vcmp.lt.f32.partialorder %v557, 0.0004427343
      %v559 = vsel %vm558, %v556, %v553
      %v560 = vadd.f32 %v514, 1.0
      %v561 = vlog2.pop %v560
      %v562 = vmul.f32 %v561, 0.6931472
      %v563 = vmul.f32 -0.5, %v514
      %v564 = vadd.f32 %v563, 1.0
      %v565 = vmul.f32 %v564, %v514
      %v566 = vand.u32 2147483647, %v514
      %vm567 = vcmp.lt.f32.partialorder %v566, 0.0004427343
      %v568 = vsel %vm567, %v565, %v562
      %v569 = vadd.f32 %v516, 1.0
      %v570 = vlog2.pop %v569
      %v571 = vmul.f32 %v570, 0.6931472
      %v572 = vmul.f32 -0.5, %v516
      %v573 = vadd.f32 %v572, 1.0
      %v574 = vmul.f32 %v573, %v516
      %v575 = vand.u32 2147483647, %v516
      %vm576 = vcmp.lt.f32.partialorder %v575, 0.0004427343
      %v577 = vsel %vm576, %v574, %v571
      %v578 = vadd.f32 %v518, 1.0
      %v579 = vlog2.pop %v578
      %v580 = vmul.f32 %v579, 0.6931472
      %v581 = vmul.f32 -0.5, %v518
      %v582 = vadd.f32 %v581, 1.0
      %v583 = vmul.f32 %v582, %v518
      %v584 = vand.u32 2147483647, %v518
      %vm585 = vcmp.lt.f32.partialorder %v584, 0.0004427343
      %v586 = vsel %vm585, %v583, %v580
      %v587 = vadd.f32 %v520, 1.0
      %v588 = vlog2.pop %v587
      %v589 = vmul.f32 %v588, 0.6931472
      %v590 = vmul.f32 -0.5, %v520
      %v591 = vadd.f32 %v590, 1.0
      %v592 = vmul.f32 %v591, %v520
      %v593 = vand.u32 2147483647, %v520
      %vm594 = vcmp.lt.f32.partialorder %v593, 0.0004427343
      %v595 = vsel %vm594, %v592, %v589
      %v596 = vadd.f32 %v522, 1.0
      %v597 = vlog2.pop %v596
      %v598 = vmul.f32 %v597, 0.6931472
      %v599 = vmul.f32 -0.5, %v522
      %v600 = vadd.f32 %v599, 1.0
      %v601 = vmul.f32 %v600, %v522
      %v602 = vand.u32 2147483647, %v522
      %vm603 = vcmp.lt.f32.partialorder %v602, 0.0004427343
      %v604 = vsel %vm603, %v601, %v598
      %v605 = vadd.f32 %v524, 1.0
      %v606 = vlog2.pop %v605
      %v607 = vmul.f32 %v606, 0.6931472
      %v608 = vmul.f32 -0.5, %v524
      %v609 = vadd.f32 %v608, 1.0
      %v610 = vmul.f32 %v609, %v524
      %v611 = vand.u32 2147483647, %v524
      %vm612 = vcmp.lt.f32.partialorder %v611, 0.0004427343
      %v613 = vsel %vm612, %v610, %v607
      %v614 = vadd.f32 %v526, 1.0
      %v615 = vlog2.pop %v614
      %v616 = vmul.f32 %v615, 0.6931472
      %v617 = vmul.f32 -0.5, %v526
      %v618 = vadd.f32 %v617, 1.0
      %v619 = vmul.f32 %v618, %v526
      %v620 = vand.u32 2147483647, %v526
      %vm621 = vcmp.lt.f32.partialorder %v620, 0.0004427343
      %v622 = vsel %vm621, %v619, %v616
      %v623 = vadd.f32 %v543, %v559
      %v624 = vadd.f32 %v544, %v568
      %v625 = vadd.f32 %v545, %v577
      %v626 = vadd.f32 %v546, %v586
      %v627 = vadd.f32 %v547, %v595
      %v628 = vadd.f32 %v548, %v604
      %v629 = vadd.f32 %v549, %v613
      %v630 = vadd.f32 %v550, %v622
      %v631 = vadd.f32 %v512, 1.0
      %v632 = vadd.f32 %v514, 1.0
      %v633 = vadd.f32 %v516, 1.0
      %v634 = vadd.f32 %v518, 1.0
      %v635 = vadd.f32 %v520, 1.0
      %v636 = vadd.f32 %v522, 1.0
      %v637 = vadd.f32 %v524, 1.0
      %v638 = vadd.f32 %v526, 1.0
      %v639 = vrcp.pop %v631
      %v640 = vrcp.pop %v632
      %v641 = vrcp.pop %v633
      %v642 = vrcp.pop %v634
      %v643 = vrcp.pop %v635
      %v644 = vrcp.pop %v636
      %v645 = vrcp.pop %v637
      %v646 = vrcp.pop %v638
      %vm647 = vcmp.ge.f32.partialorder %v431, 0.0
      %vm648 = vcmp.ge.f32.partialorder %v432, 0.0
      %vm649 = vcmp.ge.f32.partialorder %v433, 0.0
      %vm650 = vcmp.ge.f32.partialorder %v434, 0.0
      %vm651 = vcmp.ge.f32.partialorder %v435, 0.0
      %vm652 = vcmp.ge.f32.partialorder %v436, 0.0
      %vm653 = vcmp.ge.f32.partialorder %v437, 0.0
      %vm654 = vcmp.ge.f32.partialorder %v438, 0.0
      %v655 = vmul.f32 %v512, %v639
      %v656 = vmul.f32 %v514, %v640
      %v657 = vmul.f32 %v516, %v641
      %v658 = vmul.f32 %v518, %v642
      %v659 = vmul.f32 %v520, %v643
      %v660 = vmul.f32 %v522, %v644
      %v661 = vmul.f32 %v524, %v645
      %v662 = vmul.f32 %v526, %v646
      %v663 = vsel %vm647, %v639, %v655
      %v664 = vsel %vm648, %v640, %v656
      %v665 = vsel %vm649, %v641, %v657
      %v666 = vsel %vm650, %v642, %v658
      %v667 = vsel %vm651, %v643, %v659
      %v668 = vsel %vm652, %v644, %v660
      %v669 = vsel %vm653, %v645, %v661
      %v670 = vsel %vm654, %v646, %v662
      %v671 = vsub.f32 1.0, %v663
      %v672 = vsub.f32 1.0, %v664
      %v673 = vsub.f32 1.0, %v665
      %v674 = vsub.f32 1.0, %v666
      %v675 = vsub.f32 1.0, %v667
      %v676 = vsub.f32 1.0, %v668
      %v677 = vsub.f32 1.0, %v669
      %v678 = vsub.f32 1.0, %v670
      %v679 = vsel %vm447, %v671, %v663
      %v680 = vsel %vm448, %v672, %v664
      %v681 = vsel %vm449, %v673, %v665
      %v682 = vsel %vm450, %v674, %v666
      %v683 = vsel %vm451, %v675, %v667
      %v684 = vsel %vm452, %v676, %v668
      %v685 = vsel %vm453, %v677, %v669
      %v686 = vsel %vm454, %v678, %v670
      %v687 = vmul.f32 %v463, -0.5
      %v688 = vmul.f32 %v464, -0.5
      %v689 = vmul.f32 %v465, -0.5
      %v690 = vmul.f32 %v466, -0.5
      %v691 = vmul.f32 %v467, -0.5
      %v692 = vmul.f32 %v468, -0.5
      %v693 = vmul.f32 %v469, -0.5
      %v694 = vmul.f32 %v470, -0.5
      %v695 = vadd.f32 %v687, 0.75
      %v696 = vadd.f32 %v688, 0.75
      %v697 = vadd.f32 %v689, 0.75
      %v698 = vadd.f32 %v690, 0.75
      %v699 = vadd.f32 %v691, 0.75
      %v700 = vadd.f32 %v692, 0.75
      %v701 = vadd.f32 %v693, 0.75
      %v702 = vadd.f32 %v694, 0.75
      %v703 = vmul.f32 %v679, %v679
      %v704 = vmul.f32 %v680, %v680
      %v705 = vmul.f32 %v681, %v681
      %v706 = vmul.f32 %v682, %v682
      %v707 = vmul.f32 %v683, %v683
      %v708 = vmul.f32 %v684, %v684
      %v709 = vmul.f32 %v685, %v685
      %v710 = vmul.f32 %v686, %v686
      %v711 = vmul.f32 %v695, %v703
      %v712 = vmul.f32 %v696, %v704
      %v713 = vmul.f32 %v697, %v705
      %v714 = vmul.f32 %v698, %v706
      %v715 = vmul.f32 %v699, %v707
      %v716 = vmul.f32 %v700, %v708
      %v717 = vmul.f32 %v701, %v709
      %v718 = vmul.f32 %v702, %v710
      %v719 = vmul.f32 %v711, %v623
      %v720 = vmul.f32 %v712, %v624
      %v721 = vmul.f32 %v713, %v625
      %v722 = vmul.f32 %v714, %v626
      %v723 = vmul.f32 %v715, %v627
      %v724 = vmul.f32 %v716, %v628
      %v725 = vmul.f32 %v717, %v629
      %v726 = vmul.f32 %v718, %v630
      %v727 = vmul.f32 %v719, %v487
      %v728 = vmul.f32 %v720, %v488
      %v729 = vmul.f32 %v721, %v489
      %v730 = vmul.f32 %v722, %v490
      %v731 = vmul.f32 %v723, %v491
      %v732 = vmul.f32 %v724, %v492
      %v733 = vmul.f32 %v725, %v493
      %v734 = vmul.f32 %v726, %v494
      %v735 = vld [vmem:[%s398] sm:$0xff]
      %v736 = vld [vmem:[%s398 + $0x8] sm:$0xff]
      %v737 = vld [vmem:[%s398 + $0x10] sm:$0xff]
      %v738 = vld [vmem:[%s398 + $0x18] sm:$0xff]
      %v739 = vld [vmem:[%s398 + $0x20] sm:$0xff]
      %v740 = vld [vmem:[%s398 + $0x28] sm:$0xff]
      %v741 = vld [vmem:[%s398 + $0x30] sm:$0xff]
      %v742 = vld [vmem:[%s398 + $0x38] sm:$0xff]
      %v743 = vld [vmem:[%s408] sm:$0xff]
      %v744 = vld [vmem:[%s408 + $0x8] sm:$0xff]
      %v745 = vld [vmem:[%s408 + $0x10] sm:$0xff]
      %v746 = vld [vmem:[%s408 + $0x18] sm:$0xff]
      %v747 = vld [vmem:[%s408 + $0x20] sm:$0xff]
      %v748 = vld [vmem:[%s408 + $0x28] sm:$0xff]
      %v749 = vld [vmem:[%s408 + $0x30] sm:$0xff]
      %v750 = vld [vmem:[%s408 + $0x38] sm:$0xff]
      %vm751 = vcmp.ne.f32.partialorder %v743, %v743
      %vm752 = vcmp.ne.f32.partialorder %v744, %v744
      %vm753 = vcmp.ne.f32.partialorder %v745, %v745
      %vm754 = vcmp.ne.f32.partialorder %v746, %v746
      %vm755 = vcmp.ne.f32.partialorder %v747, %v747
      %vm756 = vcmp.ne.f32.partialorder %v748, %v748
      %vm757 = vcmp.ne.f32.partialorder %v749, %v749
      %vm758 = vcmp.ne.f32.partialorder %v750, %v750
      %v759 = vsel %vm751, %v735, %v743
      %v760 = vsel %vm752, %v736, %v744
      %v761 = vsel %vm753, %v737, %v745
      %v762 = vsel %vm754, %v738, %v746
      %v763 = vsel %vm755, %v739, %v747
      %v764 = vsel %vm756, %v740, %v748
      %v765 = vsel %vm757, %v741, %v749
      %v766 = vsel %vm758, %v742, %v750
      %v767 = vsub.f32 %v735, %v759
      %v768 = vsub.f32 %v736, %v760
      %v769 = vsub.f32 %v737, %v761
      %v770 = vsub.f32 %v738, %v762
      %v771 = vsub.f32 %v739, %v763
      %v772 = vsub.f32 %v740, %v764
      %v773 = vsub.f32 %v741, %v765
      %v774 = vsub.f32 %v742, %v766
      %v775 = vand.u32 2147483647, %v767
      %v776 = vand.u32 2147483647, %v768
      %v777 = vand.u32 2147483647, %v769
      %v778 = vand.u32 2147483647, %v770
      %v779 = vand.u32 2147483647, %v771
      %v780 = vand.u32 2147483647, %v772
      %v781 = vand.u32 2147483647, %v773
      %v782 = vand.u32 2147483647, %v774
      %vm783 = vcmp.lt.f32.partialorder %v775, 0.11111111
      %vm784 = vcmp.lt.f32.partialorder %v776, 0.11111111
      %vm785 = vcmp.lt.f32.partialorder %v777, 0.11111111
      %vm786 = vcmp.lt.f32.partialorder %v778, 0.11111111
      %vm787 = vcmp.lt.f32.partialorder %v779, 0.11111111
      %vm788 = vcmp.lt.f32.partialorder %v780, 0.11111111
      %vm789 = vcmp.lt.f32.partialorder %v781, 0.11111111
      %vm790 = vcmp.lt.f32.partialorder %v782, 0.11111111
      %v791 = vmul.f32 %v775, 4.5
      %v792 = vmul.f32 %v776, 4.5
      %v793 = vmul.f32 %v777, 4.5
      %v794 = vmul.f32 %v778, 4.5
      %v795 = vmul.f32 %v779, 4.5
      %v796 = vmul.f32 %v780, 4.5
      %v797 = vmul.f32 %v781, 4.5
      %v798 = vmul.f32 %v782, 4.5
      %v799 = vmul.f32 %v791, %v775
      %v800 = vmul.f32 %v792, %v776
      %v801 = vmul.f32 %v793, %v777
      %v802 = vmul.f32 %v794, %v778
      %v803 = vmul.f32 %v795, %v779
      %v804 = vmul.f32 %v796, %v780
      %v805 = vmul.f32 %v797, %v781
      %v806 = vmul.f32 %v798, %v782
      %v807 = vsub.f32 %v775, 0.055555556
      %v808 = vsub.f32 %v776, 0.055555556
      %v809 = vsub.f32 %v777, 0.055555556
      %v810 = vsub.f32 %v778, 0.055555556
      %v811 = vsub.f32 %v779, 0.055555556
      %v812 = vsub.f32 %v780, 0.055555556
      %v813 = vsub.f32 %v781, 0.055555556
      %v814 = vsub.f32 %v782, 0.055555556
      %v815 = vsel %vm783, %v799, %v807
      %v816 = vsel %vm784, %v800, %v808
      %v817 = vsel %vm785, %v801, %v809
      %v818 = vsel %vm786, %v802, %v810
      %v819 = vsel %vm787, %v803, %v811
      %v820 = vsel %vm788, %v804, %v812
      %v821 = vsel %vm789, %v805, %v813
      %v822 = vsel %vm790, %v806, %v814
      %s823 = sadd.s32 0, 64
      %s824 = scalar_lea.vmem %s398, %s823
      %v825 = vld [vmem:[%s824] sm:$0xff]
      %v826 = vld [vmem:[%s824 + $0x8] sm:$0xff]
      %v827 = vld [vmem:[%s824 + $0x10] sm:$0xff]
      %v828 = vld [vmem:[%s824 + $0x18] sm:$0xff]
      %v829 = vld [vmem:[%s824 + $0x20] sm:$0xff]
      %v830 = vld [vmem:[%s824 + $0x28] sm:$0xff]
      %v831 = vld [vmem:[%s824 + $0x30] sm:$0xff]
      %v832 = vld [vmem:[%s824 + $0x38] sm:$0xff]
      %s833 = scalar_lea.vmem %s408, %s823
      %v834 = vld [vmem:[%s833] sm:$0xff]
      %v835 = vld [vmem:[%s833 + $0x8] sm:$0xff]
      %v836 = vld [vmem:[%s833 + $0x10] sm:$0xff]
      %v837 = vld [vmem:[%s833 + $0x18] sm:$0xff]
      %v838 = vld [vmem:[%s833 + $0x20] sm:$0xff]
      %v839 = vld [vmem:[%s833 + $0x28] sm:$0xff]
      %v840 = vld [vmem:[%s833 + $0x30] sm:$0xff]
      %v841 = vld [vmem:[%s833 + $0x38] sm:$0xff]
      %vm842 = vcmp.ne.f32.partialorder %v834, %v834
      %vm843 = vcmp.ne.f32.partialorder %v835, %v835
      %vm844 = vcmp.ne.f32.partialorder %v836, %v836
      %vm845 = vcmp.ne.f32.partialorder %v837, %v837
      %vm846 = vcmp.ne.f32.partialorder %v838, %v838
      %vm847 = vcmp.ne.f32.partialorder %v839, %v839
      %vm848 = vcmp.ne.f32.partialorder %v840, %v840
      %vm849 = vcmp.ne.f32.partialorder %v841, %v841
      %v850 = vsel %vm842, %v825, %v834
      %v851 = vsel %vm843, %v826, %v835
      %v852 = vsel %vm844, %v827, %v836
      %v853 = vsel %vm845, %v828, %v837
      %v854 = vsel %vm846, %v829, %v838
      %v855 = vsel %vm847, %v830, %v839
      %v856 = vsel %vm848, %v831, %v840
      %v857 = vsel %vm849, %v832, %v841
      %v858 = vsub.f32 %v825, %v850
      %v859 = vsub.f32 %v826, %v851
      %v860 = vsub.f32 %v827, %v852
      %v861 = vsub.f32 %v828, %v853
      %v862 = vsub.f32 %v829, %v854
      %v863 = vsub.f32 %v830, %v855
      %v864 = vsub.f32 %v831, %v856
      %v865 = vsub.f32 %v832, %v857
      %v866 = vand.u32 2147483647, %v858
      %v867 = vand.u32 2147483647, %v859
      %v868 = vand.u32 2147483647, %v860
      %v869 = vand.u32 2147483647, %v861
      %v870 = vand.u32 2147483647, %v862
      %v871 = vand.u32 2147483647, %v863
      %v872 = vand.u32 2147483647, %v864
      %v873 = vand.u32 2147483647, %v865
      %vm874 = vcmp.lt.f32.partialorder %v866, 0.11111111
      %vm875 = vcmp.lt.f32.partialorder %v867, 0.11111111
      %vm876 = vcmp.lt.f32.partialorder %v868, 0.11111111
      %vm877 = vcmp.lt.f32.partialorder %v869, 0.11111111
      %vm878 = vcmp.lt.f32.partialorder %v870, 0.11111111
      %vm879 = vcmp.lt.f32.partialorder %v871, 0.11111111
      %vm880 = vcmp.lt.f32.partialorder %v872, 0.11111111
      %vm881 = vcmp.lt.f32.partialorder %v873, 0.11111111
      %v882 = vmul.f32 %v866, 4.5
      %v883 = vmul.f32 %v867, 4.5
      %v884 = vmul.f32 %v868, 4.5
      %v885 = vmul.f32 %v869, 4.5
      %v886 = vmul.f32 %v870, 4.5
      %v887 = vmul.f32 %v871, 4.5
      %v888 = vmul.f32 %v872, 4.5
      %v889 = vmul.f32 %v873, 4.5
      %v890 = vmul.f32 %v882, %v866
      %v891 = vmul.f32 %v883, %v867
      %v892 = vmul.f32 %v884, %v868
      %v893 = vmul.f32 %v885, %v869
      %v894 = vmul.f32 %v886, %v870
      %v895 = vmul.f32 %v887, %v871
      %v896 = vmul.f32 %v888, %v872
      %v897 = vmul.f32 %v889, %v873
      %v898 = vsub.f32 %v866, 0.055555556
      %v899 = vsub.f32 %v867, 0.055555556
      %v900 = vsub.f32 %v868, 0.055555556
      %v901 = vsub.f32 %v869, 0.055555556
      %v902 = vsub.f32 %v870, 0.055555556
      %v903 = vsub.f32 %v871, 0.055555556
      %v904 = vsub.f32 %v872, 0.055555556
      %v905 = vsub.f32 %v873, 0.055555556
      %v906 = vsel %vm874, %v890, %v898
      %v907 = vsel %vm875, %v891, %v899
      %v908 = vsel %vm876, %v892, %v900
      %v909 = vsel %vm877, %v893, %v901
      %v910 = vsel %vm878, %v894, %v902
      %v911 = vsel %vm879, %v895, %v903
      %v912 = vsel %vm880, %v896, %v904
      %v913 = vsel %vm881, %v897, %v905
      %v914 = vadd.f32 %v815, %v906
      %v915 = vadd.f32 %v816, %v907
      %v916 = vadd.f32 %v817, %v908
      %v917 = vadd.f32 %v818, %v909
      %v918 = vadd.f32 %v819, %v910
      %v919 = vadd.f32 %v820, %v911
      %v920 = vadd.f32 %v821, %v912
      %v921 = vadd.f32 %v822, %v913
      %s922 = sadd.s32 0, 128
      %s923 = scalar_lea.vmem %s398, %s922
      %v924 = vld [vmem:[%s923] sm:$0xff]
      %v925 = vld [vmem:[%s923 + $0x8] sm:$0xff]
      %v926 = vld [vmem:[%s923 + $0x10] sm:$0xff]
      %v927 = vld [vmem:[%s923 + $0x18] sm:$0xff]
      %v928 = vld [vmem:[%s923 + $0x20] sm:$0xff]
      %v929 = vld [vmem:[%s923 + $0x28] sm:$0xff]
      %v930 = vld [vmem:[%s923 + $0x30] sm:$0xff]
      %v931 = vld [vmem:[%s923 + $0x38] sm:$0xff]
      %s932 = scalar_lea.vmem %s408, %s922
      %v933 = vld [vmem:[%s932] sm:$0xff]
      %v934 = vld [vmem:[%s932 + $0x8] sm:$0xff]
      %v935 = vld [vmem:[%s932 + $0x10] sm:$0xff]
      %v936 = vld [vmem:[%s932 + $0x18] sm:$0xff]
      %v937 = vld [vmem:[%s932 + $0x20] sm:$0xff]
      %v938 = vld [vmem:[%s932 + $0x28] sm:$0xff]
      %v939 = vld [vmem:[%s932 + $0x30] sm:$0xff]
      %v940 = vld [vmem:[%s932 + $0x38] sm:$0xff]
      %vm941 = vcmp.ne.f32.partialorder %v933, %v933
      %vm942 = vcmp.ne.f32.partialorder %v934, %v934
      %vm943 = vcmp.ne.f32.partialorder %v935, %v935
      %vm944 = vcmp.ne.f32.partialorder %v936, %v936
      %vm945 = vcmp.ne.f32.partialorder %v937, %v937
      %vm946 = vcmp.ne.f32.partialorder %v938, %v938
      %vm947 = vcmp.ne.f32.partialorder %v939, %v939
      %vm948 = vcmp.ne.f32.partialorder %v940, %v940
      %v949 = vsel %vm941, %v924, %v933
      %v950 = vsel %vm942, %v925, %v934
      %v951 = vsel %vm943, %v926, %v935
      %v952 = vsel %vm944, %v927, %v936
      %v953 = vsel %vm945, %v928, %v937
      %v954 = vsel %vm946, %v929, %v938
      %v955 = vsel %vm947, %v930, %v939
      %v956 = vsel %vm948, %v931, %v940
      %v957 = vsub.f32 %v924, %v949
      %v958 = vsub.f32 %v925, %v950
      %v959 = vsub.f32 %v926, %v951
      %v960 = vsub.f32 %v927, %v952
      %v961 = vsub.f32 %v928, %v953
      %v962 = vsub.f32 %v929, %v954
      %v963 = vsub.f32 %v930, %v955
      %v964 = vsub.f32 %v931, %v956
      %v965 = vand.u32 2147483647, %v957
      %v966 = vand.u32 2147483647, %v958
      %v967 = vand.u32 2147483647, %v959
      %v968 = vand.u32 2147483647, %v960
      %v969 = vand.u32 2147483647, %v961
      %v970 = vand.u32 2147483647, %v962
      %v971 = vand.u32 2147483647, %v963
      %v972 = vand.u32 2147483647, %v964
      %vm973 = vcmp.lt.f32.partialorder %v965, 0.11111111
      %vm974 = vcmp.lt.f32.partialorder %v966, 0.11111111
      %vm975 = vcmp.lt.f32.partialorder %v967, 0.11111111
      %vm976 = vcmp.lt.f32.partialorder %v968, 0.11111111
      %vm977 = vcmp.lt.f32.partialorder %v969, 0.11111111
      %vm978 = vcmp.lt.f32.partialorder %v970, 0.11111111
      %vm979 = vcmp.lt.f32.partialorder %v971, 0.11111111
      %vm980 = vcmp.lt.f32.partialorder %v972, 0.11111111
      %v981 = vmul.f32 %v965, 4.5
      %v982 = vmul.f32 %v966, 4.5
      %v983 = vmul.f32 %v967, 4.5
      %v984 = vmul.f32 %v968, 4.5
      %v985 = vmul.f32 %v969, 4.5
      %v986 = vmul.f32 %v970, 4.5
      %v987 = vmul.f32 %v971, 4.5
      %v988 = vmul.f32 %v972, 4.5
      %v989 = vmul.f32 %v981, %v965
      %v990 = vmul.f32 %v982, %v966
      %v991 = vmul.f32 %v983, %v967
      %v992 = vmul.f32 %v984, %v968
      %v993 = vmul.f32 %v985, %v969
      %v994 = vmul.f32 %v986, %v970
      %v995 = vmul.f32 %v987, %v971
      %v996 = vmul.f32 %v988, %v972
      %v997 = vsub.f32 %v965, 0.055555556
      %v998 = vsub.f32 %v966, 0.055555556
      %v999 = vsub.f32 %v967, 0.055555556
      %v1000 = vsub.f32 %v968, 0.055555556
      %v1001 = vsub.f32 %v969, 0.055555556
      %v1002 = vsub.f32 %v970, 0.055555556
      %v1003 = vsub.f32 %v971, 0.055555556
      %v1004 = vsub.f32 %v972, 0.055555556
      %v1005 = vsel %vm973, %v989, %v997
      %v1006 = vsel %vm974, %v990, %v998
      %v1007 = vsel %vm975, %v991, %v999
      %v1008 = vsel %vm976, %v992, %v1000
      %v1009 = vsel %vm977, %v993, %v1001
      %v1010 = vsel %vm978, %v994, %v1002
      %v1011 = vsel %vm979, %v995, %v1003
      %v1012 = vsel %vm980, %v996, %v1004
      %v1013 = vadd.f32 %v914, %v1005
      %v1014 = vadd.f32 %v915, %v1006
      %v1015 = vadd.f32 %v916, %v1007
      %v1016 = vadd.f32 %v917, %v1008
      %v1017 = vadd.f32 %v918, %v1009
      %v1018 = vadd.f32 %v919, %v1010
      %v1019 = vadd.f32 %v920, %v1011
      %v1020 = vadd.f32 %v921, %v1012
      %s1021 = sadd.s32 0, 192
      %s1022 = scalar_lea.vmem %s398, %s1021
      %v1023 = vld [vmem:[%s1022] sm:$0xff]
      %v1024 = vld [vmem:[%s1022 + $0x8] sm:$0xff]
      %v1025 = vld [vmem:[%s1022 + $0x10] sm:$0xff]
      %v1026 = vld [vmem:[%s1022 + $0x18] sm:$0xff]
      %v1027 = vld [vmem:[%s1022 + $0x20] sm:$0xff]
      %v1028 = vld [vmem:[%s1022 + $0x28] sm:$0xff]
      %v1029 = vld [vmem:[%s1022 + $0x30] sm:$0xff]
      %v1030 = vld [vmem:[%s1022 + $0x38] sm:$0xff]
      %s1031 = scalar_lea.vmem %s408, %s1021
      %v1032 = vld [vmem:[%s1031] sm:$0xff]
      %v1033 = vld [vmem:[%s1031 + $0x8] sm:$0xff]
      %v1034 = vld [vmem:[%s1031 + $0x10] sm:$0xff]
      %v1035 = vld [vmem:[%s1031 + $0x18] sm:$0xff]
      %v1036 = vld [vmem:[%s1031 + $0x20] sm:$0xff]
      %v1037 = vld [vmem:[%s1031 + $0x28] sm:$0xff]
      %v1038 = vld [vmem:[%s1031 + $0x30] sm:$0xff]
      %v1039 = vld [vmem:[%s1031 + $0x38] sm:$0xff]
      %vm1040 = vcmp.ne.f32.partialorder %v1032, %v1032
      %vm1041 = vcmp.ne.f32.partialorder %v1033, %v1033
      %vm1042 = vcmp.ne.f32.partialorder %v1034, %v1034
      %vm1043 = vcmp.ne.f32.partialorder %v1035, %v1035
      %vm1044 = vcmp.ne.f32.partialorder %v1036, %v1036
      %vm1045 = vcmp.ne.f32.partialorder %v1037, %v1037
      %vm1046 = vcmp.ne.f32.partialorder %v1038, %v1038
      %vm1047 = vcmp.ne.f32.partialorder %v1039, %v1039
      %v1048 = vsel %vm1040, %v1023, %v1032
      %v1049 = vsel %vm1041, %v1024, %v1033
      %v1050 = vsel %vm1042, %v1025, %v1034
      %v1051 = vsel %vm1043, %v1026, %v1035
      %v1052 = vsel %vm1044, %v1027, %v1036
      %v1053 = vsel %vm1045, %v1028, %v1037
      %v1054 = vsel %vm1046, %v1029, %v1038
      %v1055 = vsel %vm1047, %v1030, %v1039
      %v1056 = vsub.f32 %v1023, %v1048
      %v1057 = vsub.f32 %v1024, %v1049
      %v1058 = vsub.f32 %v1025, %v1050
      %v1059 = vsub.f32 %v1026, %v1051
      %v1060 = vsub.f32 %v1027, %v1052
      %v1061 = vsub.f32 %v1028, %v1053
      %v1062 = vsub.f32 %v1029, %v1054
      %v1063 = vsub.f32 %v1030, %v1055
      %v1064 = vand.u32 2147483647, %v1056
      %v1065 = vand.u32 2147483647, %v1057
      %v1066 = vand.u32 2147483647, %v1058
      %v1067 = vand.u32 2147483647, %v1059
      %v1068 = vand.u32 2147483647, %v1060
      %v1069 = vand.u32 2147483647, %v1061
      %v1070 = vand.u32 2147483647, %v1062
      %v1071 = vand.u32 2147483647, %v1063
      %vm1072 = vcmp.lt.f32.partialorder %v1064, 0.11111111
      %vm1073 = vcmp.lt.f32.partialorder %v1065, 0.11111111
      %vm1074 = vcmp.lt.f32.partialorder %v1066, 0.11111111
      %vm1075 = vcmp.lt.f32.partialorder %v1067, 0.11111111
      %vm1076 = vcmp.lt.f32.partialorder %v1068, 0.11111111
      %vm1077 = vcmp.lt.f32.partialorder %v1069, 0.11111111
      %vm1078 = vcmp.lt.f32.partialorder %v1070, 0.11111111
      %vm1079 = vcmp.lt.f32.partialorder %v1071, 0.11111111
      %v1080 = vmul.f32 %v1064, 4.5
      %v1081 = vmul.f32 %v1065, 4.5
      %v1082 = vmul.f32 %v1066, 4.5
      %v1083 = vmul.f32 %v1067, 4.5
      %v1084 = vmul.f32 %v1068, 4.5
      %v1085 = vmul.f32 %v1069, 4.5
      %v1086 = vmul.f32 %v1070, 4.5
      %v1087 = vmul.f32 %v1071, 4.5
      %v1088 = vmul.f32 %v1080, %v1064
      %v1089 = vmul.f32 %v1081, %v1065
      %v1090 = vmul.f32 %v1082, %v1066
      %v1091 = vmul.f32 %v1083, %v1067
      %v1092 = vmul.f32 %v1084, %v1068
      %v1093 = vmul.f32 %v1085, %v1069
      %v1094 = vmul.f32 %v1086, %v1070
      %v1095 = vmul.f32 %v1087, %v1071
      %v1096 = vsub.f32 %v1064, 0.055555556
      %v1097 = vsub.f32 %v1065, 0.055555556
      %v1098 = vsub.f32 %v1066, 0.055555556
      %v1099 = vsub.f32 %v1067, 0.055555556
      %v1100 = vsub.f32 %v1068, 0.055555556
      %v1101 = vsub.f32 %v1069, 0.055555556
      %v1102 = vsub.f32 %v1070, 0.055555556
      %v1103 = vsub.f32 %v1071, 0.055555556
      %v1104 = vsel %vm1072, %v1088, %v1096
      %v1105 = vsel %vm1073, %v1089, %v1097
      %v1106 = vsel %vm1074, %v1090, %v1098
      %v1107 = vsel %vm1075, %v1091, %v1099
      %v1108 = vsel %vm1076, %v1092, %v1100
      %v1109 = vsel %vm1077, %v1093, %v1101
      %v1110 = vsel %vm1078, %v1094, %v1102
      %v1111 = vsel %vm1079, %v1095, %v1103
      %v1112 = vadd.f32 %v1013, %v1104
      %v1113 = vadd.f32 %v1014, %v1105
      %v1114 = vadd.f32 %v1015, %v1106
      %v1115 = vadd.f32 %v1016, %v1107
      %v1116 = vadd.f32 %v1017, %v1108
      %v1117 = vadd.f32 %v1018, %v1109
      %v1118 = vadd.f32 %v1019, %v1110
      %v1119 = vadd.f32 %v1020, %v1111
      %s1120 = sadd.s32 0, 256
      %s1121 = scalar_lea.vmem %s398, %s1120
      %v1122 = vld [vmem:[%s1121] sm:$0xff]
      %v1123 = vld [vmem:[%s1121 + $0x8] sm:$0xff]
      %v1124 = vld [vmem:[%s1121 + $0x10] sm:$0xff]
      %v1125 = vld [vmem:[%s1121 + $0x18] sm:$0xff]
      %v1126 = vld [vmem:[%s1121 + $0x20] sm:$0xff]
      %v1127 = vld [vmem:[%s1121 + $0x28] sm:$0xff]
      %v1128 = vld [vmem:[%s1121 + $0x30] sm:$0xff]
      %v1129 = vld [vmem:[%s1121 + $0x38] sm:$0xff]
      %s1130 = scalar_lea.vmem %s408, %s1120
      %v1131 = vld [vmem:[%s1130] sm:$0xff]
      %v1132 = vld [vmem:[%s1130 + $0x8] sm:$0xff]
      %v1133 = vld [vmem:[%s1130 + $0x10] sm:$0xff]
      %v1134 = vld [vmem:[%s1130 + $0x18] sm:$0xff]
      %v1135 = vld [vmem:[%s1130 + $0x20] sm:$0xff]
      %v1136 = vld [vmem:[%s1130 + $0x28] sm:$0xff]
      %v1137 = vld [vmem:[%s1130 + $0x30] sm:$0xff]
      %v1138 = vld [vmem:[%s1130 + $0x38] sm:$0xff]
      %vm1139 = vcmp.ne.f32.partialorder %v1131, %v1131
      %vm1140 = vcmp.ne.f32.partialorder %v1132, %v1132
      %vm1141 = vcmp.ne.f32.partialorder %v1133, %v1133
      %vm1142 = vcmp.ne.f32.partialorder %v1134, %v1134
      %vm1143 = vcmp.ne.f32.partialorder %v1135, %v1135
      %vm1144 = vcmp.ne.f32.partialorder %v1136, %v1136
      %vm1145 = vcmp.ne.f32.partialorder %v1137, %v1137
      %vm1146 = vcmp.ne.f32.partialorder %v1138, %v1138
      %v1147 = vsel %vm1139, %v1122, %v1131
      %v1148 = vsel %vm1140, %v1123, %v1132
      %v1149 = vsel %vm1141, %v1124, %v1133
      %v1150 = vsel %vm1142, %v1125, %v1134
      %v1151 = vsel %vm1143, %v1126, %v1135
      %v1152 = vsel %vm1144, %v1127, %v1136
      %v1153 = vsel %vm1145, %v1128, %v1137
      %v1154 = vsel %vm1146, %v1129, %v1138
      %v1155 = vsub.f32 %v1122, %v1147
      %v1156 = vsub.f32 %v1123, %v1148
      %v1157 = vsub.f32 %v1124, %v1149
      %v1158 = vsub.f32 %v1125, %v1150
      %v1159 = vsub.f32 %v1126, %v1151
      %v1160 = vsub.f32 %v1127, %v1152
      %v1161 = vsub.f32 %v1128, %v1153
      %v1162 = vsub.f32 %v1129, %v1154
      %v1163 = vand.u32 2147483647, %v1155
      %v1164 = vand.u32 2147483647, %v1156
      %v1165 = vand.u32 2147483647, %v1157
      %v1166 = vand.u32 2147483647, %v1158
      %v1167 = vand.u32 2147483647, %v1159
      %v1168 = vand.u32 2147483647, %v1160
      %v1169 = vand.u32 2147483647, %v1161
      %v1170 = vand.u32 2147483647, %v1162
      %vm1171 = vcmp.lt.f32.partialorder %v1163, 0.11111111
      %vm1172 = vcmp.lt.f32.partialorder %v1164, 0.11111111
      %vm1173 = vcmp.lt.f32.partialorder %v1165, 0.11111111
      %vm1174 = vcmp.lt.f32.partialorder %v1166, 0.11111111
      %vm1175 = vcmp.lt.f32.partialorder %v1167, 0.11111111
      %vm1176 = vcmp.lt.f32.partialorder %v1168, 0.11111111
      %vm1177 = vcmp.lt.f32.partialorder %v1169, 0.11111111
      %vm1178 = vcmp.lt.f32.partialorder %v1170, 0.11111111
      %v1179 = vmul.f32 %v1163, 4.5
      %v1180 = vmul.f32 %v1164, 4.5
      %v1181 = vmul.f32 %v1165, 4.5
      %v1182 = vmul.f32 %v1166, 4.5
      %v1183 = vmul.f32 %v1167, 4.5
      %v1184 = vmul.f32 %v1168, 4.5
      %v1185 = vmul.f32 %v1169, 4.5
      %v1186 = vmul.f32 %v1170, 4.5
      %v1187 = vmul.f32 %v1179, %v1163
      %v1188 = vmul.f32 %v1180, %v1164
      %v1189 = vmul.f32 %v1181, %v1165
      %v1190 = vmul.f32 %v1182, %v1166
      %v1191 = vmul.f32 %v1183, %v1167
      %v1192 = vmul.f32 %v1184, %v1168
      %v1193 = vmul.f32 %v1185, %v1169
      %v1194 = vmul.f32 %v1186, %v1170
      %v1195 = vsub.f32 %v1163, 0.055555556
      %v1196 = vsub.f32 %v1164, 0.055555556
      %v1197 = vsub.f32 %v1165, 0.055555556
      %v1198 = vsub.f32 %v1166, 0.055555556
      %v1199 = vsub.f32 %v1167, 0.055555556
      %v1200 = vsub.f32 %v1168, 0.055555556
      %v1201 = vsub.f32 %v1169, 0.055555556
      %v1202 = vsub.f32 %v1170, 0.055555556
      %v1203 = vsel %vm1171, %v1187, %v1195
      %v1204 = vsel %vm1172, %v1188, %v1196
      %v1205 = vsel %vm1173, %v1189, %v1197
      %v1206 = vsel %vm1174, %v1190, %v1198
      %v1207 = vsel %vm1175, %v1191, %v1199
      %v1208 = vsel %vm1176, %v1192, %v1200
      %v1209 = vsel %vm1177, %v1193, %v1201
      %v1210 = vsel %vm1178, %v1194, %v1202
      %v1211 = vadd.f32 %v1112, %v1203
      %v1212 = vadd.f32 %v1113, %v1204
      %v1213 = vadd.f32 %v1114, %v1205
      %v1214 = vadd.f32 %v1115, %v1206
      %v1215 = vadd.f32 %v1116, %v1207
      %v1216 = vadd.f32 %v1117, %v1208
      %v1217 = vadd.f32 %v1118, %v1209
      %v1218 = vadd.f32 %v1119, %v1210
      %s1219 = sadd.s32 0, 320
      %s1220 = scalar_lea.vmem %s398, %s1219
      %v1221 = vld [vmem:[%s1220] sm:$0xff]
      %v1222 = vld [vmem:[%s1220 + $0x8] sm:$0xff]
      %v1223 = vld [vmem:[%s1220 + $0x10] sm:$0xff]
      %v1224 = vld [vmem:[%s1220 + $0x18] sm:$0xff]
      %v1225 = vld [vmem:[%s1220 + $0x20] sm:$0xff]
      %v1226 = vld [vmem:[%s1220 + $0x28] sm:$0xff]
      %v1227 = vld [vmem:[%s1220 + $0x30] sm:$0xff]
      %v1228 = vld [vmem:[%s1220 + $0x38] sm:$0xff]
      %s1229 = scalar_lea.vmem %s408, %s1219
      %v1230 = vld [vmem:[%s1229] sm:$0xff]
      %v1231 = vld [vmem:[%s1229 + $0x8] sm:$0xff]
      %v1232 = vld [vmem:[%s1229 + $0x10] sm:$0xff]
      %v1233 = vld [vmem:[%s1229 + $0x18] sm:$0xff]
      %v1234 = vld [vmem:[%s1229 + $0x20] sm:$0xff]
      %v1235 = vld [vmem:[%s1229 + $0x28] sm:$0xff]
      %v1236 = vld [vmem:[%s1229 + $0x30] sm:$0xff]
      %v1237 = vld [vmem:[%s1229 + $0x38] sm:$0xff]
      %vm1238 = vcmp.ne.f32.partialorder %v1230, %v1230
      %vm1239 = vcmp.ne.f32.partialorder %v1231, %v1231
      %vm1240 = vcmp.ne.f32.partialorder %v1232, %v1232
      %vm1241 = vcmp.ne.f32.partialorder %v1233, %v1233
      %vm1242 = vcmp.ne.f32.partialorder %v1234, %v1234
      %vm1243 = vcmp.ne.f32.partialorder %v1235, %v1235
      %vm1244 = vcmp.ne.f32.partialorder %v1236, %v1236
      %vm1245 = vcmp.ne.f32.partialorder %v1237, %v1237
      %v1246 = vsel %vm1238, %v1221, %v1230
      %v1247 = vsel %vm1239, %v1222, %v1231
      %v1248 = vsel %vm1240, %v1223, %v1232
      %v1249 = vsel %vm1241, %v1224, %v1233
      %v1250 = vsel %vm1242, %v1225, %v1234
      %v1251 = vsel %vm1243, %v1226, %v1235
      %v1252 = vsel %vm1244, %v1227, %v1236
      %v1253 = vsel %vm1245, %v1228, %v1237
      %v1254 = vsub.f32 %v1221, %v1246
      %v1255 = vsub.f32 %v1222, %v1247
      %v1256 = vsub.f32 %v1223, %v1248
      %v1257 = vsub.f32 %v1224, %v1249
      %v1258 = vsub.f32 %v1225, %v1250
      %v1259 = vsub.f32 %v1226, %v1251
      %v1260 = vsub.f32 %v1227, %v1252
      %v1261 = vsub.f32 %v1228, %v1253
      %v1262 = vand.u32 2147483647, %v1254
      %v1263 = vand.u32 2147483647, %v1255
      %v1264 = vand.u32 2147483647, %v1256
      %v1265 = vand.u32 2147483647, %v1257
      %v1266 = vand.u32 2147483647, %v1258
      %v1267 = vand.u32 2147483647, %v1259
      %v1268 = vand.u32 2147483647, %v1260
      %v1269 = vand.u32 2147483647, %v1261
      %vm1270 = vcmp.lt.f32.partialorder %v1262, 0.11111111
      %vm1271 = vcmp.lt.f32.partialorder %v1263, 0.11111111
      %vm1272 = vcmp.lt.f32.partialorder %v1264, 0.11111111
      %vm1273 = vcmp.lt.f32.partialorder %v1265, 0.11111111
      %vm1274 = vcmp.lt.f32.partialorder %v1266, 0.11111111
      %vm1275 = vcmp.lt.f32.partialorder %v1267, 0.11111111
      %vm1276 = vcmp.lt.f32.partialorder %v1268, 0.11111111
      %vm1277 = vcmp.lt.f32.partialorder %v1269, 0.11111111
      %v1278 = vmul.f32 %v1262, 4.5
      %v1279 = vmul.f32 %v1263, 4.5
      %v1280 = vmul.f32 %v1264, 4.5
      %v1281 = vmul.f32 %v1265, 4.5
      %v1282 = vmul.f32 %v1266, 4.5
      %v1283 = vmul.f32 %v1267, 4.5
      %v1284 = vmul.f32 %v1268, 4.5
      %v1285 = vmul.f32 %v1269, 4.5
      %v1286 = vmul.f32 %v1278, %v1262
      %v1287 = vmul.f32 %v1279, %v1263
      %v1288 = vmul.f32 %v1280, %v1264
      %v1289 = vmul.f32 %v1281, %v1265
      %v1290 = vmul.f32 %v1282, %v1266
      %v1291 = vmul.f32 %v1283, %v1267
      %v1292 = vmul.f32 %v1284, %v1268
      %v1293 = vmul.f32 %v1285, %v1269
      %v1294 = vsub.f32 %v1262, 0.055555556
      %v1295 = vsub.f32 %v1263, 0.055555556
      %v1296 = vsub.f32 %v1264, 0.055555556
      %v1297 = vsub.f32 %v1265, 0.055555556
      %v1298 = vsub.f32 %v1266, 0.055555556
      %v1299 = vsub.f32 %v1267, 0.055555556
      %v1300 = vsub.f32 %v1268, 0.055555556
      %v1301 = vsub.f32 %v1269, 0.055555556
      %v1302 = vsel %vm1270, %v1286, %v1294
      %v1303 = vsel %vm1271, %v1287, %v1295
      %v1304 = vsel %vm1272, %v1288, %v1296
      %v1305 = vsel %vm1273, %v1289, %v1297
      %v1306 = vsel %vm1274, %v1290, %v1298
      %v1307 = vsel %vm1275, %v1291, %v1299
      %v1308 = vsel %vm1276, %v1292, %v1300
      %v1309 = vsel %vm1277, %v1293, %v1301
      %v1310 = vadd.f32 %v1211, %v1302
      %v1311 = vadd.f32 %v1212, %v1303
      %v1312 = vadd.f32 %v1213, %v1304
      %v1313 = vadd.f32 %v1214, %v1305
      %v1314 = vadd.f32 %v1215, %v1306
      %v1315 = vadd.f32 %v1216, %v1307
      %v1316 = vadd.f32 %v1217, %v1308
      %v1317 = vadd.f32 %v1218, %v1309
      %s1318 = sadd.s32 0, 384
      %s1319 = scalar_lea.vmem %s398, %s1318
      %v1320 = vld [vmem:[%s1319] sm:$0xff]
      %v1321 = vld [vmem:[%s1319 + $0x8] sm:$0xff]
      %v1322 = vld [vmem:[%s1319 + $0x10] sm:$0xff]
      %v1323 = vld [vmem:[%s1319 + $0x18] sm:$0xff]
      %v1324 = vld [vmem:[%s1319 + $0x20] sm:$0xff]
      %v1325 = vld [vmem:[%s1319 + $0x28] sm:$0xff]
      %v1326 = vld [vmem:[%s1319 + $0x30] sm:$0xff]
      %v1327 = vld [vmem:[%s1319 + $0x38] sm:$0xff]
      %s1328 = scalar_lea.vmem %s408, %s1318
      %v1329 = vld [vmem:[%s1328] sm:$0xff]
      %v1330 = vld [vmem:[%s1328 + $0x8] sm:$0xff]
      %v1331 = vld [vmem:[%s1328 + $0x10] sm:$0xff]
      %v1332 = vld [vmem:[%s1328 + $0x18] sm:$0xff]
      %v1333 = vld [vmem:[%s1328 + $0x20] sm:$0xff]
      %v1334 = vld [vmem:[%s1328 + $0x28] sm:$0xff]
      %v1335 = vld [vmem:[%s1328 + $0x30] sm:$0xff]
      %v1336 = vld [vmem:[%s1328 + $0x38] sm:$0xff]
      %v1337 = vsub.f32 %v1320, %v1329
      %v1338 = vsub.f32 %v1321, %v1330
      %v1339 = vsub.f32 %v1322, %v1331
      %v1340 = vsub.f32 %v1323, %v1332
      %v1341 = vsub.f32 %v1324, %v1333
      %v1342 = vsub.f32 %v1325, %v1334
      %v1343 = vsub.f32 %v1326, %v1335
      %v1344 = vsub.f32 %v1327, %v1336
      %v1345 = vand.u32 2147483647, %v1337
      %vm1346 = vcmp.le.f32.partialorder %v1345, 0.7853982
      %vm1347 = vcmp.lt.s32.totalorder %v1337, 0
      %v1348 = vand.u32 %v1337, 2139095040
      %v1349 = vshrl.u32 %v1348, 23
      %v1350 = vsub.s32 %v1349, 127
      %v1351 = vand.u32 2147483647, %v1337
      %v1352 = vand.u32 %v1351, 8388607
      %v1353 = vor.u32 %v1352, 8388608
      %v1354 = vsub.s32 0, %v1353
      %v1355 = vadd.s32 %v1350, 1
      %vm1356 = vcmp.gt.s32.totalorder %v1355, 0
      %v1357 = vsel %vm1356, %v1355, 0
      %v1358 = vshrl.u32 %v1357, 5
      %v1359 = vand.u32 %v1357, 31
      %v1360 = vsub.s32 32, %v1359
      %v1361 = vshrl.u32 683565275, %v1360
      %v1362 = vshll.u32 683565275, %v1359
      %v1363 = vshrl.u32 2475754826, %v1360
      %v1364 = vor.u32 %v1362, %v1363
      %v1365 = vshll.u32 2475754826, %v1359
      %v1366 = vshrl.u32 2131351028, %v1360
      %v1367 = vor.u32 %v1365, %v1366
      %v1368 = vshll.u32 2131351028, %v1359
      %v1369 = vshrl.u32 2102212464, %v1360
      %v1370 = vor.u32 %v1368, %v1369
      %v1371 = vshll.u32 2102212464, %v1359
      %v1372 = vshrl.u32 920167782, %v1360
      %v1373 = vor.u32 %v1371, %v1372
      %v1374 = vshll.u32 920167782, %v1359
      %v1375 = vshrl.u32 1326507024, %v1360
      %v1376 = vor.u32 %v1374, %v1375
      %vm1377 = vcmp.lt.s32.totalorder %v1358, 1
      %vm1378 = vcmp.lt.s32.totalorder %v1358, 2
      %vm1379 = vcmp.lt.s32.totalorder %v1358, 3
      %vm1380 = vcmp.lt.s32.totalorder %v1358, 4
      %v1381 = vsel %vm1377, %v1361, %v1364
      %v1382 = vsel %vm1380, %v1370, 2102212464
      %v1383 = vsel %vm1379, %v1367, %v1382
      %v1384 = vsel %vm1378, %v1381, %v1383
      %v1385 = vsel %vm1377, %v1364, %v1367
      %v1386 = vsel %vm1380, %v1373, 920167782
      %v1387 = vsel %vm1379, %v1370, %v1386
      %v1388 = vsel %vm1378, %v1385, %v1387
      %v1389 = vsel %vm1377, %v1367, %v1370
      %v1390 = vsel %vm1380, %v1376, 1326507024
      %v1391 = vsel %vm1379, %v1373, %v1390
      %v1392 = vsel %vm1378, %v1389, %v1391
      %v1393 = vshll.u32 %v1353, 8
      %v1394 = vmul.u32.u64.compose %v1393, %v1392
      %v1395 = vextract.low.u32 %v1394
      %v1396 = vextract.high.u32 %v1394
      %v1397 = vmul.u32.u64.compose %v1393, %v1388
      %v1398 = vextract.low.u32 %v1397
      %v1399 = vextract.high.u32 %v1397
      %v1400 = vmul.u32 %v1393, %v1384
      %v1401 = vadd.s32 %v1396, %v1398
      %vm1402 = vc.u32 %v1396, %v1398
      %v1403 = vadd.s32 %v1399, 1
      %v1404 = vsel %vm1402, %v1403, %v1399
      %v1405 = vadd.s32 %v1400, %v1404
      %v1406 = vadd.s32 %v1405, 536870912
      %v1407 = vshrl.u32 %v1406, 30
      %v1408 = vshll.u32 %v1407, 30
      %v1409 = vsub.s32 %v1405, %v1408
      %vm1410 = vcmp.lt.s32.totalorder %v1409, 0
      %v1411 = vsub.s32 0, %v1409
      %v1412 = vsel %vm1410, %v1411, %v1409
      %v1413 = vclz %v1412
      %v1414 = vsub.s32 %v1413, 2
      %vm1415 = vcmp.gt.s32.totalorder 0, %v1414
      %v1416 = vsel %vm1415, 0, %v1414
      %v1417 = vsub.s32 32, %v1416
      %v1418 = vshll.u32 %v1409, %v1416
      %v1419 = vshrl.u32 %v1401, %v1417
      %v1420 = vor.u32 %v1418, %v1419
      %v1421 = vsub.s32 4294967266, %v1416
      %v1422 = vadd.s32 %v1421, 127
      %v1423 = vshll.u32 %v1422, 23
      %v1424 = vor.u32 4788187, %v1423
      %v1425 = vand.u32 2147483647, %v1424
      %v1427 = vcvt.s32.f32 %v1420
      %v1428 = vmul.f32 %v1427, %v1425
      %v1429 = vxor.u32 %v1428, 2147483648
      %v1430 = vsel %vm1347, %v1429, %v1428
      %v1431 = vsub.s32 4, %v1407
      %v1432 = vsel %vm1347, %v1431, %v1407
      %v1433 = vsel %vm1346, %v1337, %v1430
      %v1434 = vsel %vm1346, 0, %v1432
      %v1435 = vcosq.f32.pop %v1433
      %v1436 = vsinq.f32.pop %v1433
      %vm1437 = vweird.f32 %v1337
      %v1438 = vadd.s32 %v1434, 3
      %v1439 = vand.u32 %v1438, 3
      %vm1440 = vcmp.lt.s32.totalorder %v1439, 2
      %vm1441 = vcmp.eq.s32.totalorder %v1439, 0
      %v1442 = vxor.u32 %v1436, 2147483648
      %v1443 = vsel %vm1441, %v1435, %v1442
      %vm1444 = vcmp.eq.s32.totalorder %v1439, 2
      %v1445 = vxor.u32 %v1435, 2147483648
      %v1446 = vsel %vm1444, %v1445, %v1436
      %v1447 = vsel %vm1440, %v1443, %v1446
      %v1448 = vsel %vm1437, nan, %v1447
      %v1449 = vand.u32 2147483647, %v1338
      %vm1450 = vcmp.le.f32.partialorder %v1449, 0.7853982
      %vm1451 = vcmp.lt.s32.totalorder %v1338, 0
      %v1452 = vand.u32 %v1338, 2139095040
      %v1453 = vshrl.u32 %v1452, 23
      %v1454 = vsub.s32 %v1453, 127
      %v1455 = vand.u32 2147483647, %v1338
      %v1456 = vand.u32 %v1455, 8388607
      %v1457 = vor.u32 %v1456, 8388608
      %v1458 = vsub.s32 0, %v1457
      %v1459 = vadd.s32 %v1454, 1
      %vm1460 = vcmp.gt.s32.totalorder %v1459, 0
      %v1461 = vsel %vm1460, %v1459, 0
      %v1462 = vshrl.u32 %v1461, 5
      %v1463 = vand.u32 %v1461, 31
      %v1464 = vsub.s32 32, %v1463
      %v1465 = vshrl.u32 683565275, %v1464
      %v1466 = vshll.u32 683565275, %v1463
      %v1467 = vshrl.u32 2475754826, %v1464
      %v1468 = vor.u32 %v1466, %v1467
      %v1469 = vshll.u32 2475754826, %v1463
      %v1470 = vshrl.u32 2131351028, %v1464
      %v1471 = vor.u32 %v1469, %v1470
      %v1472 = vshll.u32 2131351028, %v1463
      %v1473 = vshrl.u32 2102212464, %v1464
      %v1474 = vor.u32 %v1472, %v1473
      %v1475 = vshll.u32 2102212464, %v1463
      %v1476 = vshrl.u32 920167782, %v1464
      %v1477 = vor.u32 %v1475, %v1476
      %v1478 = vshll.u32 920167782, %v1463
      %v1479 = vshrl.u32 1326507024, %v1464
      %v1480 = vor.u32 %v1478, %v1479
      %vm1481 = vcmp.lt.s32.totalorder %v1462, 1
      %vm1482 = vcmp.lt.s32.totalorder %v1462, 2
      %vm1483 = vcmp.lt.s32.totalorder %v1462, 3
      %vm1484 = vcmp.lt.s32.totalorder %v1462, 4
      %v1485 = vsel %vm1481, %v1465, %v1468
      %v1486 = vsel %vm1484, %v1474, 2102212464
      %v1487 = vsel %vm1483, %v1471, %v1486
      %v1488 = vsel %vm1482, %v1485, %v1487
      %v1489 = vsel %vm1481, %v1468, %v1471
      %v1490 = vsel %vm1484, %v1477, 920167782
      %v1491 = vsel %vm1483, %v1474, %v1490
      %v1492 = vsel %vm1482, %v1489, %v1491
      %v1493 = vsel %vm1481, %v1471, %v1474
      %v1494 = vsel %vm1484, %v1480, 1326507024
      %v1495 = vsel %vm1483, %v1477, %v1494
      %v1496 = vsel %vm1482, %v1493, %v1495
      %v1497 = vshll.u32 %v1457, 8
      %v1498 = vmul.u32.u64.compose %v1497, %v1496
      %v1499 = vextract.low.u32 %v1498
      %v1500 = vextract.high.u32 %v1498
      %v1501 = vmul.u32.u64.compose %v1497, %v1492
      %v1502 = vextract.low.u32 %v1501
      %v1503 = vextract.high.u32 %v1501
      %v1504 = vmul.u32 %v1497, %v1488
      %v1505 = vadd.s32 %v1500, %v1502
      %vm1506 = vc.u32 %v1500, %v1502
      %v1507 = vadd.s32 %v1503, 1
      %v1508 = vsel %vm1506, %v1507, %v1503
      %v1509 = vadd.s32 %v1504, %v1508
      %v1510 = vadd.s32 %v1509, 536870912
      %v1511 = vshrl.u32 %v1510, 30
      %v1512 = vshll.u32 %v1511, 30
      %v1513 = vsub.s32 %v1509, %v1512
      %vm1514 = vcmp.lt.s32.totalorder %v1513, 0
      %v1515 = vsub.s32 0, %v1513
      %v1516 = vsel %vm1514, %v1515, %v1513
      %v1517 = vclz %v1516
      %v1518 = vsub.s32 %v1517, 2
      %vm1519 = vcmp.gt.s32.totalorder 0, %v1518
      %v1520 = vsel %vm1519, 0, %v1518
      %v1521 = vsub.s32 32, %v1520
      %v1522 = vshll.u32 %v1513, %v1520
      %v1523 = vshrl.u32 %v1505, %v1521
      %v1524 = vor.u32 %v1522, %v1523
      %v1525 = vsub.s32 4294967266, %v1520
      %v1526 = vadd.s32 %v1525, 127
      %v1527 = vshll.u32 %v1526, 23
      %v1528 = vor.u32 4788187, %v1527
      %v1529 = vand.u32 2147483647, %v1528
      %v1531 = vcvt.s32.f32 %v1524
      %v1532 = vmul.f32 %v1531, %v1529
      %v1533 = vxor.u32 %v1532, 2147483648
      %v1534 = vsel %vm1451, %v1533, %v1532
      %v1535 = vsub.s32 4, %v1511
      %v1536 = vsel %vm1451, %v1535, %v1511
      %v1537 = vsel %vm1450, %v1338, %v1534
      %v1538 = vsel %vm1450, 0, %v1536
      %v1539 = vcosq.f32.pop %v1537
      %v1540 = vsinq.f32.pop %v1537
      %vm1541 = vweird.f32 %v1338
      %v1542 = vadd.s32 %v1538, 3
      %v1543 = vand.u32 %v1542, 3
      %vm1544 = vcmp.lt.s32.totalorder %v1543, 2
      %vm1545 = vcmp.eq.s32.totalorder %v1543, 0
      %v1546 = vxor.u32 %v1540, 2147483648
      %v1547 = vsel %vm1545, %v1539, %v1546
      %vm1548 = vcmp.eq.s32.totalorder %v1543, 2
      %v1549 = vxor.u32 %v1539, 2147483648
      %v1550 = vsel %vm1548, %v1549, %v1540
      %v1551 = vsel %vm1544, %v1547, %v1550
      %v1552 = vsel %vm1541, nan, %v1551
      %v1553 = vand.u32 2147483647, %v1339
      %vm1554 = vcmp.le.f32.partialorder %v1553, 0.7853982
      %vm1555 = vcmp.lt.s32.totalorder %v1339, 0
      %v1556 = vand.u32 %v1339, 2139095040
      %v1557 = vshrl.u32 %v1556, 23
      %v1558 = vsub.s32 %v1557, 127
      %v1559 = vand.u32 2147483647, %v1339
      %v1560 = vand.u32 %v1559, 8388607
      %v1561 = vor.u32 %v1560, 8388608
      %v1562 = vsub.s32 0, %v1561
      %v1563 = vadd.s32 %v1558, 1
      %vm1564 = vcmp.gt.s32.totalorder %v1563, 0
      %v1565 = vsel %vm1564, %v1563, 0
      %v1566 = vshrl.u32 %v1565, 5
      %v1567 = vand.u32 %v1565, 31
      %v1568 = vsub.s32 32, %v1567
      %v1569 = vshrl.u32 683565275, %v1568
      %v1570 = vshll.u32 683565275, %v1567
      %v1571 = vshrl.u32 2475754826, %v1568
      %v1572 = vor.u32 %v1570, %v1571
      %v1573 = vshll.u32 2475754826, %v1567
      %v1574 = vshrl.u32 2131351028, %v1568
      %v1575 = vor.u32 %v1573, %v1574
      %v1576 = vshll.u32 2131351028, %v1567
      %v1577 = vshrl.u32 2102212464, %v1568
      %v1578 = vor.u32 %v1576, %v1577
      %v1579 = vshll.u32 2102212464, %v1567
      %v1580 = vshrl.u32 920167782, %v1568
      %v1581 = vor.u32 %v1579, %v1580
      %v1582 = vshll.u32 920167782, %v1567
      %v1583 = vshrl.u32 1326507024, %v1568
      %v1584 = vor.u32 %v1582, %v1583
      %vm1585 = vcmp.lt.s32.totalorder %v1566, 1
      %vm1586 = vcmp.lt.s32.totalorder %v1566, 2
      %vm1587 = vcmp.lt.s32.totalorder %v1566, 3
      %vm1588 = vcmp.lt.s32.totalorder %v1566, 4
      %v1589 = vsel %vm1585, %v1569, %v1572
      %v1590 = vsel %vm1588, %v1578, 2102212464
      %v1591 = vsel %vm1587, %v1575, %v1590
      %v1592 = vsel %vm1586, %v1589, %v1591
      %v1593 = vsel %vm1585, %v1572, %v1575
      %v1594 = vsel %vm1588, %v1581, 920167782
      %v1595 = vsel %vm1587, %v1578, %v1594
      %v1596 = vsel %vm1586, %v1593, %v1595
      %v1597 = vsel %vm1585, %v1575, %v1578
      %v1598 = vsel %vm1588, %v1584, 1326507024
      %v1599 = vsel %vm1587, %v1581, %v1598
      %v1600 = vsel %vm1586, %v1597, %v1599
      %v1601 = vshll.u32 %v1561, 8
      %v1602 = vmul.u32.u64.compose %v1601, %v1600
      %v1603 = vextract.low.u32 %v1602
      %v1604 = vextract.high.u32 %v1602
      %v1605 = vmul.u32.u64.compose %v1601, %v1596
      %v1606 = vextract.low.u32 %v1605
      %v1607 = vextract.high.u32 %v1605
      %v1608 = vmul.u32 %v1601, %v1592
      %v1609 = vadd.s32 %v1604, %v1606
      %vm1610 = vc.u32 %v1604, %v1606
      %v1611 = vadd.s32 %v1607, 1
      %v1612 = vsel %vm1610, %v1611, %v1607
      %v1613 = vadd.s32 %v1608, %v1612
      %v1614 = vadd.s32 %v1613, 536870912
      %v1615 = vshrl.u32 %v1614, 30
      %v1616 = vshll.u32 %v1615, 30
      %v1617 = vsub.s32 %v1613, %v1616
      %vm1618 = vcmp.lt.s32.totalorder %v1617, 0
      %v1619 = vsub.s32 0, %v1617
      %v1620 = vsel %vm1618, %v1619, %v1617
      %v1621 = vclz %v1620
      %v1622 = vsub.s32 %v1621, 2
      %vm1623 = vcmp.gt.s32.totalorder 0, %v1622
      %v1624 = vsel %vm1623, 0, %v1622
      %v1625 = vsub.s32 32, %v1624
      %v1626 = vshll.u32 %v1617, %v1624
      %v1627 = vshrl.u32 %v1609, %v1625
      %v1628 = vor.u32 %v1626, %v1627
      %v1629 = vsub.s32 4294967266, %v1624
      %v1630 = vadd.s32 %v1629, 127
      %v1631 = vshll.u32 %v1630, 23
      %v1632 = vor.u32 4788187, %v1631
      %v1633 = vand.u32 2147483647, %v1632
      %v1635 = vcvt.s32.f32 %v1628
      %v1636 = vmul.f32 %v1635, %v1633
      %v1637 = vxor.u32 %v1636, 2147483648
      %v1638 = vsel %vm1555, %v1637, %v1636
      %v1639 = vsub.s32 4, %v1615
      %v1640 = vsel %vm1555, %v1639, %v1615
      %v1641 = vsel %vm1554, %v1339, %v1638
      %v1642 = vsel %vm1554, 0, %v1640
      %v1643 = vcosq.f32.pop %v1641
      %v1644 = vsinq.f32.pop %v1641
      %vm1645 = vweird.f32 %v1339
      %v1646 = vadd.s32 %v1642, 3
      %v1647 = vand.u32 %v1646, 3
      %vm1648 = vcmp.lt.s32.totalorder %v1647, 2
      %vm1649 = vcmp.eq.s32.totalorder %v1647, 0
      %v1650 = vxor.u32 %v1644, 2147483648
      %v1651 = vsel %vm1649, %v1643, %v1650
      %vm1652 = vcmp.eq.s32.totalorder %v1647, 2
      %v1653 = vxor.u32 %v1643, 2147483648
      %v1654 = vsel %vm1652, %v1653, %v1644
      %v1655 = vsel %vm1648, %v1651, %v1654
      %v1656 = vsel %vm1645, nan, %v1655
      %v1657 = vand.u32 2147483647, %v1340
      %vm1658 = vcmp.le.f32.partialorder %v1657, 0.7853982
      %vm1659 = vcmp.lt.s32.totalorder %v1340, 0
      %v1660 = vand.u32 %v1340, 2139095040
      %v1661 = vshrl.u32 %v1660, 23
      %v1662 = vsub.s32 %v1661, 127
      %v1663 = vand.u32 2147483647, %v1340
      %v1664 = vand.u32 %v1663, 8388607
      %v1665 = vor.u32 %v1664, 8388608
      %v1666 = vsub.s32 0, %v1665
      %v1667 = vadd.s32 %v1662, 1
      %vm1668 = vcmp.gt.s32.totalorder %v1667, 0
      %v1669 = vsel %vm1668, %v1667, 0
      %v1670 = vshrl.u32 %v1669, 5
      %v1671 = vand.u32 %v1669, 31
      %v1672 = vsub.s32 32, %v1671
      %v1673 = vshrl.u32 683565275, %v1672
      %v1674 = vshll.u32 683565275, %v1671
      %v1675 = vshrl.u32 2475754826, %v1672
      %v1676 = vor.u32 %v1674, %v1675
      %v1677 = vshll.u32 2475754826, %v1671
      %v1678 = vshrl.u32 2131351028, %v1672
      %v1679 = vor.u32 %v1677, %v1678
      %v1680 = vshll.u32 2131351028, %v1671
      %v1681 = vshrl.u32 2102212464, %v1672
      %v1682 = vor.u32 %v1680, %v1681
      %v1683 = vshll.u32 2102212464, %v1671
      %v1684 = vshrl.u32 920167782, %v1672
      %v1685 = vor.u32 %v1683, %v1684
      %v1686 = vshll.u32 920167782, %v1671
      %v1687 = vshrl.u32 1326507024, %v1672
      %v1688 = vor.u32 %v1686, %v1687
      %vm1689 = vcmp.lt.s32.totalorder %v1670, 1
      %vm1690 = vcmp.lt.s32.totalorder %v1670, 2
      %vm1691 = vcmp.lt.s32.totalorder %v1670, 3
      %vm1692 = vcmp.lt.s32.totalorder %v1670, 4
      %v1693 = vsel %vm1689, %v1673, %v1676
      %v1694 = vsel %vm1692, %v1682, 2102212464
      %v1695 = vsel %vm1691, %v1679, %v1694
      %v1696 = vsel %vm1690, %v1693, %v1695
      %v1697 = vsel %vm1689, %v1676, %v1679
      %v1698 = vsel %vm1692, %v1685, 920167782
      %v1699 = vsel %vm1691, %v1682, %v1698
      %v1700 = vsel %vm1690, %v1697, %v1699
      %v1701 = vsel %vm1689, %v1679, %v1682
      %v1702 = vsel %vm1692, %v1688, 1326507024
      %v1703 = vsel %vm1691, %v1685, %v1702
      %v1704 = vsel %vm1690, %v1701, %v1703
      %v1705 = vshll.u32 %v1665, 8
      %v1706 = vmul.u32.u64.compose %v1705, %v1704
      %v1707 = vextract.low.u32 %v1706
      %v1708 = vextract.high.u32 %v1706
      %v1709 = vmul.u32.u64.compose %v1705, %v1700
      %v1710 = vextract.low.u32 %v1709
      %v1711 = vextract.high.u32 %v1709
      %v1712 = vmul.u32 %v1705, %v1696
      %v1713 = vadd.s32 %v1708, %v1710
      %vm1714 = vc.u32 %v1708, %v1710
      %v1715 = vadd.s32 %v1711, 1
      %v1716 = vsel %vm1714, %v1715, %v1711
      %v1717 = vadd.s32 %v1712, %v1716
      %v1718 = vadd.s32 %v1717, 536870912
      %v1719 = vshrl.u32 %v1718, 30
      %v1720 = vshll.u32 %v1719, 30
      %v1721 = vsub.s32 %v1717, %v1720
      %vm1722 = vcmp.lt.s32.totalorder %v1721, 0
      %v1723 = vsub.s32 0, %v1721
      %v1724 = vsel %vm1722, %v1723, %v1721
      %v1725 = vclz %v1724
      %v1726 = vsub.s32 %v1725, 2
      %vm1727 = vcmp.gt.s32.totalorder 0, %v1726
      %v1728 = vsel %vm1727, 0, %v1726
      %v1729 = vsub.s32 32, %v1728
      %v1730 = vshll.u32 %v1721, %v1728
      %v1731 = vshrl.u32 %v1713, %v1729
      %v1732 = vor.u32 %v1730, %v1731
      %v1733 = vsub.s32 4294967266, %v1728
      %v1734 = vadd.s32 %v1733, 127
      %v1735 = vshll.u32 %v1734, 23
      %v1736 = vor.u32 4788187, %v1735
      %v1737 = vand.u32 2147483647, %v1736
      %v1739 = vcvt.s32.f32 %v1732
      %v1740 = vmul.f32 %v1739, %v1737
      %v1741 = vxor.u32 %v1740, 2147483648
      %v1742 = vsel %vm1659, %v1741, %v1740
      %v1743 = vsub.s32 4, %v1719
      %v1744 = vsel %vm1659, %v1743, %v1719
      %v1745 = vsel %vm1658, %v1340, %v1742
      %v1746 = vsel %vm1658, 0, %v1744
      %v1747 = vcosq.f32.pop %v1745
      %v1748 = vsinq.f32.pop %v1745
      %vm1749 = vweird.f32 %v1340
      %v1750 = vadd.s32 %v1746, 3
      %v1751 = vand.u32 %v1750, 3
      %vm1752 = vcmp.lt.s32.totalorder %v1751, 2
      %vm1753 = vcmp.eq.s32.totalorder %v1751, 0
      %v1754 = vxor.u32 %v1748, 2147483648
      %v1755 = vsel %vm1753, %v1747, %v1754
      %vm1756 = vcmp.eq.s32.totalorder %v1751, 2
      %v1757 = vxor.u32 %v1747, 2147483648
      %v1758 = vsel %vm1756, %v1757, %v1748
      %v1759 = vsel %vm1752, %v1755, %v1758
      %v1760 = vsel %vm1749, nan, %v1759
      %v1761 = vand.u32 2147483647, %v1341
      %vm1762 = vcmp.le.f32.partialorder %v1761, 0.7853982
      %vm1763 = vcmp.lt.s32.totalorder %v1341, 0
      %v1764 = vand.u32 %v1341, 2139095040
      %v1765 = vshrl.u32 %v1764, 23
      %v1766 = vsub.s32 %v1765, 127
      %v1767 = vand.u32 2147483647, %v1341
      %v1768 = vand.u32 %v1767, 8388607
      %v1769 = vor.u32 %v1768, 8388608
      %v1770 = vsub.s32 0, %v1769
      %v1771 = vadd.s32 %v1766, 1
      %vm1772 = vcmp.gt.s32.totalorder %v1771, 0
      %v1773 = vsel %vm1772, %v1771, 0
      %v1774 = vshrl.u32 %v1773, 5
      %v1775 = vand.u32 %v1773, 31
      %v1776 = vsub.s32 32, %v1775
      %v1777 = vshrl.u32 683565275, %v1776
      %v1778 = vshll.u32 683565275, %v1775
      %v1779 = vshrl.u32 2475754826, %v1776
      %v1780 = vor.u32 %v1778, %v1779
      %v1781 = vshll.u32 2475754826, %v1775
      %v1782 = vshrl.u32 2131351028, %v1776
      %v1783 = vor.u32 %v1781, %v1782
      %v1784 = vshll.u32 2131351028, %v1775
      %v1785 = vshrl.u32 2102212464, %v1776
      %v1786 = vor.u32 %v1784, %v1785
      %v1787 = vshll.u32 2102212464, %v1775
      %v1788 = vshrl.u32 920167782, %v1776
      %v1789 = vor.u32 %v1787, %v1788
      %v1790 = vshll.u32 920167782, %v1775
      %v1791 = vshrl.u32 1326507024, %v1776
      %v1792 = vor.u32 %v1790, %v1791
      %vm1793 = vcmp.lt.s32.totalorder %v1774, 1
      %vm1794 = vcmp.lt.s32.totalorder %v1774, 2
      %vm1795 = vcmp.lt.s32.totalorder %v1774, 3
      %vm1796 = vcmp.lt.s32.totalorder %v1774, 4
      %v1797 = vsel %vm1793, %v1777, %v1780
      %v1798 = vsel %vm1796, %v1786, 2102212464
      %v1799 = vsel %vm1795, %v1783, %v1798
      %v1800 = vsel %vm1794, %v1797, %v1799
      %v1801 = vsel %vm1793, %v1780, %v1783
      %v1802 = vsel %vm1796, %v1789, 920167782
      %v1803 = vsel %vm1795, %v1786, %v1802
      %v1804 = vsel %vm1794, %v1801, %v1803
      %v1805 = vsel %vm1793, %v1783, %v1786
      %v1806 = vsel %vm1796, %v1792, 1326507024
      %v1807 = vsel %vm1795, %v1789, %v1806
      %v1808 = vsel %vm1794, %v1805, %v1807
      %v1809 = vshll.u32 %v1769, 8
      %v1810 = vmul.u32.u64.compose %v1809, %v1808
      %v1811 = vextract.low.u32 %v1810
      %v1812 = vextract.high.u32 %v1810
      %v1813 = vmul.u32.u64.compose %v1809, %v1804
      %v1814 = vextract.low.u32 %v1813
      %v1815 = vextract.high.u32 %v1813
      %v1816 = vmul.u32 %v1809, %v1800
      %v1817 = vadd.s32 %v1812, %v1814
      %vm1818 = vc.u32 %v1812, %v1814
      %v1819 = vadd.s32 %v1815, 1
      %v1820 = vsel %vm1818, %v1819, %v1815
      %v1821 = vadd.s32 %v1816, %v1820
      %v1822 = vadd.s32 %v1821, 536870912
      %v1823 = vshrl.u32 %v1822, 30
      %v1824 = vshll.u32 %v1823, 30
      %v1825 = vsub.s32 %v1821, %v1824
      %vm1826 = vcmp.lt.s32.totalorder %v1825, 0
      %v1827 = vsub.s32 0, %v1825
      %v1828 = vsel %vm1826, %v1827, %v1825
      %v1829 = vclz %v1828
      %v1830 = vsub.s32 %v1829, 2
      %vm1831 = vcmp.gt.s32.totalorder 0, %v1830
      %v1832 = vsel %vm1831, 0, %v1830
      %v1833 = vsub.s32 32, %v1832
      %v1834 = vshll.u32 %v1825, %v1832
      %v1835 = vshrl.u32 %v1817, %v1833
      %v1836 = vor.u32 %v1834, %v1835
      %v1837 = vsub.s32 4294967266, %v1832
      %v1838 = vadd.s32 %v1837, 127
      %v1839 = vshll.u32 %v1838, 23
      %v1840 = vor.u32 4788187, %v1839
      %v1841 = vand.u32 2147483647, %v1840
      %v1843 = vcvt.s32.f32 %v1836
      %v1844 = vmul.f32 %v1843, %v1841
      %v1845 = vxor.u32 %v1844, 2147483648
      %v1846 = vsel %vm1763, %v1845, %v1844
      %v1847 = vsub.s32 4, %v1823
      %v1848 = vsel %vm1763, %v1847, %v1823
      %v1849 = vsel %vm1762, %v1341, %v1846
      %v1850 = vsel %vm1762, 0, %v1848
      %v1851 = vcosq.f32.pop %v1849
      %v1852 = vsinq.f32.pop %v1849
      %vm1853 = vweird.f32 %v1341
      %v1854 = vadd.s32 %v1850, 3
      %v1855 = vand.u32 %v1854, 3
      %vm1856 = vcmp.lt.s32.totalorder %v1855, 2
      %vm1857 = vcmp.eq.s32.totalorder %v1855, 0
      %v1858 = vxor.u32 %v1852, 2147483648
      %v1859 = vsel %vm1857, %v1851, %v1858
      %vm1860 = vcmp.eq.s32.totalorder %v1855, 2
      %v1861 = vxor.u32 %v1851, 2147483648
      %v1862 = vsel %vm1860, %v1861, %v1852
      %v1863 = vsel %vm1856, %v1859, %v1862
      %v1864 = vsel %vm1853, nan, %v1863
      %v1865 = vand.u32 2147483647, %v1342
      %vm1866 = vcmp.le.f32.partialorder %v1865, 0.7853982
      %vm1867 = vcmp.lt.s32.totalorder %v1342, 0
      %v1868 = vand.u32 %v1342, 2139095040
      %v1869 = vshrl.u32 %v1868, 23
      %v1870 = vsub.s32 %v1869, 127
      %v1871 = vand.u32 2147483647, %v1342
      %v1872 = vand.u32 %v1871, 8388607
      %v1873 = vor.u32 %v1872, 8388608
      %v1874 = vsub.s32 0, %v1873
      %v1875 = vadd.s32 %v1870, 1
      %vm1876 = vcmp.gt.s32.totalorder %v1875, 0
      %v1877 = vsel %vm1876, %v1875, 0
      %v1878 = vshrl.u32 %v1877, 5
      %v1879 = vand.u32 %v1877, 31
      %v1880 = vsub.s32 32, %v1879
      %v1881 = vshrl.u32 683565275, %v1880
      %v1882 = vshll.u32 683565275, %v1879
      %v1883 = vshrl.u32 2475754826, %v1880
      %v1884 = vor.u32 %v1882, %v1883
      %v1885 = vshll.u32 2475754826, %v1879
      %v1886 = vshrl.u32 2131351028, %v1880
      %v1887 = vor.u32 %v1885, %v1886
      %v1888 = vshll.u32 2131351028, %v1879
      %v1889 = vshrl.u32 2102212464, %v1880
      %v1890 = vor.u32 %v1888, %v1889
      %v1891 = vshll.u32 2102212464, %v1879
      %v1892 = vshrl.u32 920167782, %v1880
      %v1893 = vor.u32 %v1891, %v1892
      %v1894 = vshll.u32 920167782, %v1879
      %v1895 = vshrl.u32 1326507024, %v1880
      %v1896 = vor.u32 %v1894, %v1895
      %vm1897 = vcmp.lt.s32.totalorder %v1878, 1
      %vm1898 = vcmp.lt.s32.totalorder %v1878, 2
      %vm1899 = vcmp.lt.s32.totalorder %v1878, 3
      %vm1900 = vcmp.lt.s32.totalorder %v1878, 4
      %v1901 = vsel %vm1897, %v1881, %v1884
      %v1902 = vsel %vm1900, %v1890, 2102212464
      %v1903 = vsel %vm1899, %v1887, %v1902
      %v1904 = vsel %vm1898, %v1901, %v1903
      %v1905 = vsel %vm1897, %v1884, %v1887
      %v1906 = vsel %vm1900, %v1893, 920167782
      %v1907 = vsel %vm1899, %v1890, %v1906
      %v1908 = vsel %vm1898, %v1905, %v1907
      %v1909 = vsel %vm1897, %v1887, %v1890
      %v1910 = vsel %vm1900, %v1896, 1326507024
      %v1911 = vsel %vm1899, %v1893, %v1910
      %v1912 = vsel %vm1898, %v1909, %v1911
      %v1913 = vshll.u32 %v1873, 8
      %v1914 = vmul.u32.u64.compose %v1913, %v1912
      %v1915 = vextract.low.u32 %v1914
      %v1916 = vextract.high.u32 %v1914
      %v1917 = vmul.u32.u64.compose %v1913, %v1908
      %v1918 = vextract.low.u32 %v1917
      %v1919 = vextract.high.u32 %v1917
      %v1920 = vmul.u32 %v1913, %v1904
      %v1921 = vadd.s32 %v1916, %v1918
      %vm1922 = vc.u32 %v1916, %v1918
      %v1923 = vadd.s32 %v1919, 1
      %v1924 = vsel %vm1922, %v1923, %v1919
      %v1925 = vadd.s32 %v1920, %v1924
      %v1926 = vadd.s32 %v1925, 536870912
      %v1927 = vshrl.u32 %v1926, 30
      %v1928 = vshll.u32 %v1927, 30
      %v1929 = vsub.s32 %v1925, %v1928
      %vm1930 = vcmp.lt.s32.totalorder %v1929, 0
      %v1931 = vsub.s32 0, %v1929
      %v1932 = vsel %vm1930, %v1931, %v1929
      %v1933 = vclz %v1932
      %v1934 = vsub.s32 %v1933, 2
      %vm1935 = vcmp.gt.s32.totalorder 0, %v1934
      %v1936 = vsel %vm1935, 0, %v1934
      %v1937 = vsub.s32 32, %v1936
      %v1938 = vshll.u32 %v1929, %v1936
      %v1939 = vshrl.u32 %v1921, %v1937
      %v1940 = vor.u32 %v1938, %v1939
      %v1941 = vsub.s32 4294967266, %v1936
      %v1942 = vadd.s32 %v1941, 127
      %v1943 = vshll.u32 %v1942, 23
      %v1944 = vor.u32 4788187, %v1943
      %v1945 = vand.u32 2147483647, %v1944
      %v1947 = vcvt.s32.f32 %v1940
      %v1948 = vmul.f32 %v1947, %v1945
      %v1949 = vxor.u32 %v1948, 2147483648
      %v1950 = vsel %vm1867, %v1949, %v1948
      %v1951 = vsub.s32 4, %v1927
      %v1952 = vsel %vm1867, %v1951, %v1927
      %v1953 = vsel %vm1866, %v1342, %v1950
      %v1954 = vsel %vm1866, 0, %v1952
      %v1955 = vcosq.f32.pop %v1953
      %v1956 = vsinq.f32.pop %v1953
      %vm1957 = vweird.f32 %v1342
      %v1958 = vadd.s32 %v1954, 3
      %v1959 = vand.u32 %v1958, 3
      %vm1960 = vcmp.lt.s32.totalorder %v1959, 2
      %vm1961 = vcmp.eq.s32.totalorder %v1959, 0
      %v1962 = vxor.u32 %v1956, 2147483648
      %v1963 = vsel %vm1961, %v1955, %v1962
      %vm1964 = vcmp.eq.s32.totalorder %v1959, 2
      %v1965 = vxor.u32 %v1955, 2147483648
      %v1966 = vsel %vm1964, %v1965, %v1956
      %v1967 = vsel %vm1960, %v1963, %v1966
      %v1968 = vsel %vm1957, nan, %v1967
      %v1969 = vand.u32 2147483647, %v1343
      %vm1970 = vcmp.le.f32.partialorder %v1969, 0.7853982
      %vm1971 = vcmp.lt.s32.totalorder %v1343, 0
      %v1972 = vand.u32 %v1343, 2139095040
      %v1973 = vshrl.u32 %v1972, 23
      %v1974 = vsub.s32 %v1973, 127
      %v1975 = vand.u32 2147483647, %v1343
      %v1976 = vand.u32 %v1975, 8388607
      %v1977 = vor.u32 %v1976, 8388608
      %v1978 = vsub.s32 0, %v1977
      %v1979 = vadd.s32 %v1974, 1
      %vm1980 = vcmp.gt.s32.totalorder %v1979, 0
      %v1981 = vsel %vm1980, %v1979, 0
      %v1982 = vshrl.u32 %v1981, 5
      %v1983 = vand.u32 %v1981, 31
      %v1984 = vsub.s32 32, %v1983
      %v1985 = vshrl.u32 683565275, %v1984
      %v1986 = vshll.u32 683565275, %v1983
      %v1987 = vshrl.u32 2475754826, %v1984
      %v1988 = vor.u32 %v1986, %v1987
      %v1989 = vshll.u32 2475754826, %v1983
      %v1990 = vshrl.u32 2131351028, %v1984
      %v1991 = vor.u32 %v1989, %v1990
      %v1992 = vshll.u32 2131351028, %v1983
      %v1993 = vshrl.u32 2102212464, %v1984
      %v1994 = vor.u32 %v1992, %v1993
      %v1995 = vshll.u32 2102212464, %v1983
      %v1996 = vshrl.u32 920167782, %v1984
      %v1997 = vor.u32 %v1995, %v1996
      %v1998 = vshll.u32 920167782, %v1983
      %v1999 = vshrl.u32 1326507024, %v1984
      %v2000 = vor.u32 %v1998, %v1999
      %vm2001 = vcmp.lt.s32.totalorder %v1982, 1
      %vm2002 = vcmp.lt.s32.totalorder %v1982, 2
      %vm2003 = vcmp.lt.s32.totalorder %v1982, 3
      %vm2004 = vcmp.lt.s32.totalorder %v1982, 4
      %v2005 = vsel %vm2001, %v1985, %v1988
      %v2006 = vsel %vm2004, %v1994, 2102212464
      %v2007 = vsel %vm2003, %v1991, %v2006
      %v2008 = vsel %vm2002, %v2005, %v2007
      %v2009 = vsel %vm2001, %v1988, %v1991
      %v2010 = vsel %vm2004, %v1997, 920167782
      %v2011 = vsel %vm2003, %v1994, %v2010
      %v2012 = vsel %vm2002, %v2009, %v2011
      %v2013 = vsel %vm2001, %v1991, %v1994
      %v2014 = vsel %vm2004, %v2000, 1326507024
      %v2015 = vsel %vm2003, %v1997, %v2014
      %v2016 = vsel %vm2002, %v2013, %v2015
      %v2017 = vshll.u32 %v1977, 8
      %v2018 = vmul.u32.u64.compose %v2017, %v2016
      %v2019 = vextract.low.u32 %v2018
      %v2020 = vextract.high.u32 %v2018
      %v2021 = vmul.u32.u64.compose %v2017, %v2012
      %v2022 = vextract.low.u32 %v2021
      %v2023 = vextract.high.u32 %v2021
      %v2024 = vmul.u32 %v2017, %v2008
      %v2025 = vadd.s32 %v2020, %v2022
      %vm2026 = vc.u32 %v2020, %v2022
      %v2027 = vadd.s32 %v2023, 1
      %v2028 = vsel %vm2026, %v2027, %v2023
      %v2029 = vadd.s32 %v2024, %v2028
      %v2030 = vadd.s32 %v2029, 536870912
      %v2031 = vshrl.u32 %v2030, 30
      %v2032 = vshll.u32 %v2031, 30
      %v2033 = vsub.s32 %v2029, %v2032
      %vm2034 = vcmp.lt.s32.totalorder %v2033, 0
      %v2035 = vsub.s32 0, %v2033
      %v2036 = vsel %vm2034, %v2035, %v2033
      %v2037 = vclz %v2036
      %v2038 = vsub.s32 %v2037, 2
      %vm2039 = vcmp.gt.s32.totalorder 0, %v2038
      %v2040 = vsel %vm2039, 0, %v2038
      %v2041 = vsub.s32 32, %v2040
      %v2042 = vshll.u32 %v2033, %v2040
      %v2043 = vshrl.u32 %v2025, %v2041
      %v2044 = vor.u32 %v2042, %v2043
      %v2045 = vsub.s32 4294967266, %v2040
      %v2046 = vadd.s32 %v2045, 127
      %v2047 = vshll.u32 %v2046, 23
      %v2048 = vor.u32 4788187, %v2047
      %v2049 = vand.u32 2147483647, %v2048
      %v2051 = vcvt.s32.f32 %v2044
      %v2052 = vmul.f32 %v2051, %v2049
      %v2053 = vxor.u32 %v2052, 2147483648
      %v2054 = vsel %vm1971, %v2053, %v2052
      %v2055 = vsub.s32 4, %v2031
      %v2056 = vsel %vm1971, %v2055, %v2031
      %v2057 = vsel %vm1970, %v1343, %v2054
      %v2058 = vsel %vm1970, 0, %v2056
      %v2059 = vcosq.f32.pop %v2057
      %v2060 = vsinq.f32.pop %v2057
      %vm2061 = vweird.f32 %v1343
      %v2062 = vadd.s32 %v2058, 3
      %v2063 = vand.u32 %v2062, 3
      %vm2064 = vcmp.lt.s32.totalorder %v2063, 2
      %vm2065 = vcmp.eq.s32.totalorder %v2063, 0
      %v2066 = vxor.u32 %v2060, 2147483648
      %v2067 = vsel %vm2065, %v2059, %v2066
      %vm2068 = vcmp.eq.s32.totalorder %v2063, 2
      %v2069 = vxor.u32 %v2059, 2147483648
      %v2070 = vsel %vm2068, %v2069, %v2060
      %v2071 = vsel %vm2064, %v2067, %v2070
      %v2072 = vsel %vm2061, nan, %v2071
      %v2073 = vand.u32 2147483647, %v1344
      %vm2074 = vcmp.le.f32.partialorder %v2073, 0.7853982
      %vm2075 = vcmp.lt.s32.totalorder %v1344, 0
      %v2076 = vand.u32 %v1344, 2139095040
      %v2077 = vshrl.u32 %v2076, 23
      %v2078 = vsub.s32 %v2077, 127
      %v2079 = vand.u32 2147483647, %v1344
      %v2080 = vand.u32 %v2079, 8388607
      %v2081 = vor.u32 %v2080, 8388608
      %v2082 = vsub.s32 0, %v2081
      %v2083 = vadd.s32 %v2078, 1
      %vm2084 = vcmp.gt.s32.totalorder %v2083, 0
      %v2085 = vsel %vm2084, %v2083, 0
      %v2086 = vshrl.u32 %v2085, 5
      %v2087 = vand.u32 %v2085, 31
      %v2088 = vsub.s32 32, %v2087
      %v2089 = vshrl.u32 683565275, %v2088
      %v2090 = vshll.u32 683565275, %v2087
      %v2091 = vshrl.u32 2475754826, %v2088
      %v2092 = vor.u32 %v2090, %v2091
      %v2093 = vshll.u32 2475754826, %v2087
      %v2094 = vshrl.u32 2131351028, %v2088
      %v2095 = vor.u32 %v2093, %v2094
      %v2096 = vshll.u32 2131351028, %v2087
      %v2097 = vshrl.u32 2102212464, %v2088
      %v2098 = vor.u32 %v2096, %v2097
      %v2099 = vshll.u32 2102212464, %v2087
      %v2100 = vshrl.u32 920167782, %v2088
      %v2101 = vor.u32 %v2099, %v2100
      %v2102 = vshll.u32 920167782, %v2087
      %v2103 = vshrl.u32 1326507024, %v2088
      %v2104 = vor.u32 %v2102, %v2103
      %vm2105 = vcmp.lt.s32.totalorder %v2086, 1
      %vm2106 = vcmp.lt.s32.totalorder %v2086, 2
      %vm2107 = vcmp.lt.s32.totalorder %v2086, 3
      %vm2108 = vcmp.lt.s32.totalorder %v2086, 4
      %v2109 = vsel %vm2105, %v2089, %v2092
      %v2110 = vsel %vm2108, %v2098, 2102212464
      %v2111 = vsel %vm2107, %v2095, %v2110
      %v2112 = vsel %vm2106, %v2109, %v2111
      %v2113 = vsel %vm2105, %v2092, %v2095
      %v2114 = vsel %vm2108, %v2101, 920167782
      %v2115 = vsel %vm2107, %v2098, %v2114
      %v2116 = vsel %vm2106, %v2113, %v2115
      %v2117 = vsel %vm2105, %v2095, %v2098
      %v2118 = vsel %vm2108, %v2104, 1326507024
      %v2119 = vsel %vm2107, %v2101, %v2118
      %v2120 = vsel %vm2106, %v2117, %v2119
      %v2121 = vshll.u32 %v2081, 8
      %v2122 = vmul.u32.u64.compose %v2121, %v2120
      %v2123 = vextract.low.u32 %v2122
      %v2124 = vextract.high.u32 %v2122
      %v2125 = vmul.u32.u64.compose %v2121, %v2116
      %v2126 = vextract.low.u32 %v2125
      %v2127 = vextract.high.u32 %v2125
      %v2128 = vmul.u32 %v2121, %v2112
      %v2129 = vadd.s32 %v2124, %v2126
      %vm2130 = vc.u32 %v2124, %v2126
      %v2131 = vadd.s32 %v2127, 1
      %v2132 = vsel %vm2130, %v2131, %v2127
      %v2133 = vadd.s32 %v2128, %v2132
      %v2134 = vadd.s32 %v2133, 536870912
      %v2135 = vshrl.u32 %v2134, 30
      %v2136 = vshll.u32 %v2135, 30
      %v2137 = vsub.s32 %v2133, %v2136
      %vm2138 = vcmp.lt.s32.totalorder %v2137, 0
      %v2139 = vsub.s32 0, %v2137
      %v2140 = vsel %vm2138, %v2139, %v2137
      %v2141 = vclz %v2140
      %v2142 = vsub.s32 %v2141, 2
      %vm2143 = vcmp.gt.s32.totalorder 0, %v2142
      %v2144 = vsel %vm2143, 0, %v2142
      %v2145 = vsub.s32 32, %v2144
      %v2146 = vshll.u32 %v2137, %v2144
      %v2147 = vshrl.u32 %v2129, %v2145
      %v2148 = vor.u32 %v2146, %v2147
      %v2149 = vsub.s32 4294967266, %v2144
      %v2150 = vadd.s32 %v2149, 127
      %v2151 = vshll.u32 %v2150, 23
      %v2152 = vor.u32 4788187, %v2151
      %v2153 = vand.u32 2147483647, %v2152
      %v2155 = vcvt.s32.f32 %v2148
      %v2156 = vmul.f32 %v2155, %v2153
      %v2157 = vxor.u32 %v2156, 2147483648
      %v2158 = vsel %vm2075, %v2157, %v2156
      %v2159 = vsub.s32 4, %v2135
      %v2160 = vsel %vm2075, %v2159, %v2135
      %v2161 = vsel %vm2074, %v1344, %v2158
      %v2162 = vsel %vm2074, 0, %v2160
      %v2163 = vcosq.f32.pop %v2161
      %v2164 = vsinq.f32.pop %v2161
      %vm2165 = vweird.f32 %v1344
      %v2166 = vadd.s32 %v2162, 3
      %v2167 = vand.u32 %v2166, 3
      %vm2168 = vcmp.lt.s32.totalorder %v2167, 2
      %vm2169 = vcmp.eq.s32.totalorder %v2167, 0
      %v2170 = vxor.u32 %v2164, 2147483648
      %v2171 = vsel %vm2169, %v2163, %v2170
      %vm2172 = vcmp.eq.s32.totalorder %v2167, 2
      %v2173 = vxor.u32 %v2163, 2147483648
      %v2174 = vsel %vm2172, %v2173, %v2164
      %v2175 = vsel %vm2168, %v2171, %v2174
      %v2176 = vsel %vm2165, nan, %v2175
      %v2177 = vand.u32 2147483647, %v1448
      %v2178 = vand.u32 2147483647, %v1552
      %v2179 = vand.u32 2147483647, %v1656
      %v2180 = vand.u32 2147483647, %v1760
      %v2181 = vand.u32 2147483647, %v1864
      %v2182 = vand.u32 2147483647, %v1968
      %v2183 = vand.u32 2147483647, %v2072
      %v2184 = vand.u32 2147483647, %v2176
      %vm2185 = vcmp.lt.f32.partialorder %v2177, 0.11111111
      %vm2186 = vcmp.lt.f32.partialorder %v2178, 0.11111111
      %vm2187 = vcmp.lt.f32.partialorder %v2179, 0.11111111
      %vm2188 = vcmp.lt.f32.partialorder %v2180, 0.11111111
      %vm2189 = vcmp.lt.f32.partialorder %v2181, 0.11111111
      %vm2190 = vcmp.lt.f32.partialorder %v2182, 0.11111111
      %vm2191 = vcmp.lt.f32.partialorder %v2183, 0.11111111
      %vm2192 = vcmp.lt.f32.partialorder %v2184, 0.11111111
      %v2193 = vmul.f32 %v2177, 4.5
      %v2194 = vmul.f32 %v2178, 4.5
      %v2195 = vmul.f32 %v2179, 4.5
      %v2196 = vmul.f32 %v2180, 4.5
      %v2197 = vmul.f32 %v2181, 4.5
      %v2198 = vmul.f32 %v2182, 4.5
      %v2199 = vmul.f32 %v2183, 4.5
      %v2200 = vmul.f32 %v2184, 4.5
      %v2201 = vmul.f32 %v2193, %v2177
      %v2202 = vmul.f32 %v2194, %v2178
      %v2203 = vmul.f32 %v2195, %v2179
      %v2204 = vmul.f32 %v2196, %v2180
      %v2205 = vmul.f32 %v2197, %v2181
      %v2206 = vmul.f32 %v2198, %v2182
      %v2207 = vmul.f32 %v2199, %v2183
      %v2208 = vmul.f32 %v2200, %v2184
      %v2209 = vsub.f32 %v2177, 0.055555556
      %v2210 = vsub.f32 %v2178, 0.055555556
      %v2211 = vsub.f32 %v2179, 0.055555556
      %v2212 = vsub.f32 %v2180, 0.055555556
      %v2213 = vsub.f32 %v2181, 0.055555556
      %v2214 = vsub.f32 %v2182, 0.055555556
      %v2215 = vsub.f32 %v2183, 0.055555556
      %v2216 = vsub.f32 %v2184, 0.055555556
      %v2217 = vsel %vm2185, %v2201, %v2209
      %v2218 = vsel %vm2186, %v2202, %v2210
      %v2219 = vsel %vm2187, %v2203, %v2211
      %v2220 = vsel %vm2188, %v2204, %v2212
      %v2221 = vsel %vm2189, %v2205, %v2213
      %v2222 = vsel %vm2190, %v2206, %v2214
      %v2223 = vsel %vm2191, %v2207, %v2215
      %v2224 = vsel %vm2192, %v2208, %v2216
      %v2225 = vadd.f32 %v1310, %v2217
      %v2226 = vadd.f32 %v1311, %v2218
      %v2227 = vadd.f32 %v1312, %v2219
      %v2228 = vadd.f32 %v1313, %v2220
      %v2229 = vadd.f32 %v1314, %v2221
      %v2230 = vadd.f32 %v1315, %v2222
      %v2231 = vadd.f32 %v1316, %v2223
      %v2232 = vadd.f32 %v1317, %v2224
      %v2233 = vadd.f32 %v727, %v728
      %v2234 = vadd.f32 %v2233, %v729
      %v2235 = vadd.f32 %v2234, %v730
      %v2236 = vadd.f32 %v2235, %v731
      %v2237 = vadd.f32 %v2236, %v732
      %v2238 = vadd.f32 %v2237, %v733
      %v2239 = vadd.f32 %v2238, %v734
      %v2240 = vadd.f32 %v2239, 0.0
      %v2241 = vmul.f32 %v2225, %v463
      %v2242 = vmul.f32 %v2226, %v464
      %v2243 = vmul.f32 %v2227, %v465
      %v2244 = vmul.f32 %v2228, %v466
      %v2245 = vmul.f32 %v2229, %v467
      %v2246 = vmul.f32 %v2230, %v468
      %v2247 = vmul.f32 %v2231, %v469
      %v2248 = vmul.f32 %v2232, %v470
      %v2249 = vadd.f32 %v2241, %v2242
      %v2250 = vadd.f32 %v2249, %v2243
      %v2251 = vadd.f32 %v2250, %v2244
      %v2252 = vadd.f32 %v2251, %v2245
      %v2253 = vadd.f32 %v2252, %v2246
      %v2254 = vadd.f32 %v2253, %v2247
      %v2255 = vadd.f32 %v2254, %v2248
      %v2256 = vadd.f32 %v2255, 0.0
      %v2257 = vadd.f32 %v463, %v464
      %v2258 = vadd.f32 %v2257, %v465
      %v2259 = vadd.f32 %v2258, %v466
      %v2260 = vadd.f32 %v2259, %v467
      %v2261 = vadd.f32 %v2260, %v468
      %v2262 = vadd.f32 %v2261, %v469
      %v2263 = vadd.f32 %v2262, %v470
      %v2264 = vadd.f32 %v2263, 0.0
      %2265 = vst [vmem:[%s416] sm:$0xff] %v2240
      %2266 = vst [vmem:[%s423] sm:$0xff] %v2256
      %2267 = vst [vmem:[%s430] sm:$0xff] %v2264
      %p2268 = scmp.lt.s32.totalorder %s22, 1
      %s2269 = scalar_select %p2268, %s22, 1
      %p2270 = scmp.lt.s32.totalorder %s23, 0
      %s2271 = scalar_select %p2270, %s23, 0
      %s2272 = sadd.s32 %s2271, %s2269
      %s2273 = smul.addr %s2272, 8
      %s2274 = scalar_lea.vmem %s4, %s2273
      %p2275 = scmp.lt.s32.totalorder %s22, 1
      %s2276 = scalar_select %p2275, %s22, 1
      %p2277 = scmp.lt.s32.totalorder %s23, 0
      %s2278 = scalar_select %p2277, %s23, 0
      %s2279 = sadd.s32 %s2278, %s2276
      %s2280 = smul.addr %s2279, 8
      %s2281 = scalar_lea.vmem %s5, %s2280
      %p2282 = scmp.lt.s32.totalorder %s22, 1
      %s2283 = scalar_select %p2282, %s22, 1
      %p2284 = scmp.lt.s32.totalorder %s23, 0
      %s2285 = scalar_select %p2284, %s23, 0
      %s2286 = sadd.s32 %s2285, %s2283
      %s2287 = smul.addr %s2286, 8
      %s2288 = scalar_lea.vmem %s6, %s2287
      // Predicated region
      $region37: #{point_pillar_loss.1} parent=35 // pred_check
        %p2289 = pneg %p162
      $region38: #{point_pillar_loss.1} parent=35 // pred_check_branch
        %2291 = sbr.rel (%p2289) target = $region40
      $region39: #{point_pillar_loss.1} parent=35 // pred_region
        _
      $region40: #{point_pillar_loss.1} parent=35 // pred_fallthru
        _
      // Predicated region
      $region41: #{point_pillar_loss.1} parent=35 // pred_check
        %p2292 = pneg %p190
      $region42: #{point_pillar_loss.1} parent=35 // pred_check_branch
        %2294 = sbr.rel (%p2292) target = $region44
      $region43: #{point_pillar_loss.1} parent=35 // pred_region
        _
      $region44: #{point_pillar_loss.1} parent=35 // pred_fallthru
        _
      // Predicated region
      $region45: #{point_pillar_loss.1} parent=35 // pred_check
        %p2295 = pneg %p218
      $region46: #{point_pillar_loss.1} parent=35 // pred_check_branch
        %2297 = sbr.rel (%p2295) target = $region48
      $region47: #{point_pillar_loss.1} parent=35 // pred_region
        _
      $region48: #{point_pillar_loss.1} parent=35 // pred_fallthru
        _
    $region36: #{point_pillar_loss.1} parent=5 // pred_fallthru
      _
    %p2298 = scmp.le.s32.totalorder 2, %s13
    // Predicated region
    $region49: #{point_pillar_loss.1} parent=5 // pred_check
      %p2299 = pneg %p2298
    $region50: #{point_pillar_loss.1} parent=5 // pred_check_branch
      %2301 = sbr.rel (%p2299) target = $region52
    $region51: #{point_pillar_loss.1} parent=5 // pred_region
      %s2302 = ssub.s32 %s13, 2
      // Predicated region
      $region53: #{point_pillar_loss.1} parent=51 // pred_check
        %p2303 = pneg %p168
      $region54: #{point_pillar_loss.1} parent=51 // pred_check_branch
        %2305 = sbr.rel (%p2303) target = $region56
      $region55: #{point_pillar_loss.1} parent=51 // pred_region
        %p2306 = scmp.lt.s32.totalorder %s24, 1
        %s2307 = scalar_select %p2306, %s24, 1
        %p2308 = scmp.lt.s32.totalorder %s25, 0
        %s2309 = scalar_select %p2308, %s25, 0
        %s2310 = sadd.s32 %s2309, %s2307
        %s2311 = smul.addr %s2310, 8
        %s2312 = scalar_lea.vmem %s4, %s2311
      $region56: #{point_pillar_loss.1} parent=51 // pred_fallthru
        _
      // Predicated region
      $region57: #{point_pillar_loss.1} parent=51 // pred_check
        %p2313 = pneg %p196
      $region58: #{point_pillar_loss.1} parent=51 // pred_check_branch
        %2315 = sbr.rel (%p2313) target = $region60
      $region59: #{point_pillar_loss.1} parent=51 // pred_region
        %p2316 = scmp.lt.s32.totalorder %s24, 1
        %s2317 = scalar_select %p2316, %s24, 1
        %p2318 = scmp.lt.s32.totalorder %s25, 0
        %s2319 = scalar_select %p2318, %s25, 0
        %s2320 = sadd.s32 %s2319, %s2317
        %s2321 = smul.addr %s2320, 8
        %s2322 = scalar_lea.vmem %s5, %s2321
      $region60: #{point_pillar_loss.1} parent=51 // pred_fallthru
        _
      // Predicated region
      $region61: #{point_pillar_loss.1} parent=51 // pred_check
        %p2323 = pneg %p224
      $region62: #{point_pillar_loss.1} parent=51 // pred_check_branch
        %2325 = sbr.rel (%p2323) target = $region64
      $region63: #{point_pillar_loss.1} parent=51 // pred_region
        %p2326 = scmp.lt.s32.totalorder %s24, 1
        %s2327 = scalar_select %p2326, %s24, 1
        %p2328 = scmp.lt.s32.totalorder %s25, 0
        %s2329 = scalar_select %p2328, %s25, 0
        %s2330 = sadd.s32 %s2329, %s2327
        %s2331 = smul.addr %s2330, 8
        %s2332 = scalar_lea.vmem %s6, %s2331
      $region64: #{point_pillar_loss.1} parent=51 // pred_fallthru
        _
    $region52: #{point_pillar_loss.1} parent=5 // pred_fallthru
      _
  $region6: #{point_pillar_loss.1} parent=0 // loop_footer
    %s17 = sadd.s32 1, %s13
  $region7: #{point_pillar_loss.1} parent=0 // loop_footer_branch
    %12 = sbr.rel target = $region3
  $region8: #{point_pillar_loss.1} parent=0 // loop_exit
    _

</llo_original>
